<compile_context>
chip_gen: v7x
topology: tpu7x:2x2x1
jax: 0.10.0
libtpu: 0.0.40
codegen_flags: <defaults>
</compile_context>

<pallas_src>
import functools

import jax
import jax.numpy as jnp
from jax import lax
from jax.experimental import pallas as pl
from jax.experimental.pallas import tpu as pltpu

_EPS = 1e-5


# ----------------------------------------------------------------------------
# Parameter construction (deterministic, synthetic) -- same layout as before
# ----------------------------------------------------------------------------
def _fold_bn(gamma, beta, mean, var):
    scale = gamma / jnp.sqrt(var + _EPS)
    bias = beta - mean * scale
    return (scale.reshape(1, -1).astype(jnp.float32),
            bias.reshape(1, -1).astype(jnp.float32))


def init_params(key, inp, oup, stride):
    if not 1 <= stride <= 3:
        raise ValueError("illegal stride value")
    bf = oup // 2
    assert stride != 1 or inp == bf * 2
    ks = jax.random.split(key, 10)

    def w(k, shape, fan_in):
        return jax.random.normal(k, shape, jnp.float32) / jnp.sqrt(float(fan_in))

    def bn(k, c):
        k1, k2, k3, k4 = jax.random.split(k, 4)
        gamma = 1.0 + 0.1 * jax.random.normal(k1, (c,), jnp.float32)
        beta = 0.1 * jax.random.normal(k2, (c,), jnp.float32)
        mean = 0.1 * jax.random.normal(k3, (c,), jnp.float32)
        var = 1.0 + 0.1 * jax.random.uniform(k4, (c,), jnp.float32)
        return _fold_bn(gamma, beta, mean, var)

    params = {}
    c_in2 = inp if stride > 1 else bf
    s1, b1 = bn(ks[0], bf)
    s2, b2 = bn(ks[1], bf)
    s3, b3 = bn(ks[2], bf)
    params["branch2"] = dict(
        w1=w(ks[3], (c_in2, bf), c_in2), s1=s1, b1=b1,   # 1x1 conv + BN + ReLU
        wd=w(ks[4], (9, bf), 9), s2=s2, b2=b2,           # 3x3 dw conv + BN
        w3=w(ks[5], (bf, bf), bf), s3=s3, b3=b3,         # 1x1 conv + BN + ReLU
    )
    if stride > 1:
        sA, bA = bn(ks[6], inp)
        sB, bB = bn(ks[7], bf)
        params["branch1"] = dict(
            wd=w(ks[8], (9, inp), 9), sA=sA, bA=bA,      # 3x3 dw conv + BN
            w1=w(ks[9], (inp, bf), inp), sB=sB, bB=bB,   # 1x1 conv + BN + ReLU
        )
    return params


# ----------------------------------------------------------------------------
# In-kernel helpers
# ----------------------------------------------------------------------------
def _depthwise(pad_ref, img, wd, bias, *, stride, H, W, Hout, Wout):
    """3x3 depthwise conv (padding=1, given stride) + per-channel bias.

    img:  (H, W, C) value in registers (BN scale already folded into wd).
    wd:   (9, C)    folded taps, already loaded into registers.
    bias: (1, C)
    pad_ref: persistent (H+2, W+2, C) VMEM scratch. Only the 1-px halo is
    zeroed (4 small stores); the interior is fully overwritten each call.
    """
    C = img.shape[-1]
    zrow = jnp.zeros((1, W + 2, C), jnp.float32)
    zcol = jnp.zeros((H, 1, C), jnp.float32)
    pad_ref[pl.ds(0, 1), :, :] = zrow                      # top halo row
    pad_ref[pl.ds(H + 1, 1), :, :] = zrow                  # bottom halo row
    pad_ref[pl.ds(1, H), pl.ds(0, 1), :] = zcol            # left halo col
    pad_ref[pl.ds(1, H), pl.ds(W + 1, 1), :] = zcol        # right halo col
    pad_ref[pl.ds(1, H), pl.ds(1, W), :] = img             # interior

    acc = jnp.zeros((Hout, Wout, C), jnp.float32)
    for k in range(9):
        kh, kw = k // 3, k % 3
        if stride == 1:
            win = pad_ref[pl.ds(kh, Hout), pl.ds(kw, Wout), :]
        else:
            win = pad_ref[pl.ds(kh, Hout, stride=stride),
                          pl.ds(kw, Wout, stride=stride), :]
        acc = acc + win * wd[k:k + 1]                      # (1, C) tap broadcast
    return acc + bias


# ----------------------------------------------------------------------------
# Fused kernels
# ----------------------------------------------------------------------------
def _fused_kernel_s1(x_ref, w1_ref, b1_ref, wd_ref, b2_ref,
                     wa_ref, wb_ref, bt_ref, fl_ref, o_ref, pad_ref,
                     *, H, W, bf):
    """stride == 1: out = shuffle(cat(x1, branch2(x2)), groups=2)."""
    P = H * W
    xf = x_ref[0].reshape(P, 2 * bf)        # channels = [x1 | x2]

    # branch2 head: 1x1 conv (+BN folded) + ReLU.  x2 selection is folded into
    # w1 (its first bf rows are zero), so no in-kernel channel slicing needed.
    y = jnp.maximum(
        jnp.dot(xf, w1_ref[...], preferred_element_type=jnp.float32) + b1_ref[...],
        0.0)

    # branch2: 3x3 depthwise conv (+BN folded), stride 1.
    y2 = _depthwise(pad_ref, y.reshape(H, W, bf), wd_ref[...], b2_ref[...],
                    stride=1, H=H, W=W, Hout=H, Wout=W)

    # fused tail: x1 passthrough -> even output channels, branch2 1x1+BN+ReLU
    # -> odd output channels (channel shuffle folded into the weight columns).
    pre = (jnp.dot(xf, wa_ref[...], preferred_element_type=jnp.float32)
           + jnp.dot(y2.reshape(P, bf), wb_ref[...],
                     preferred_element_type=jnp.float32)
           + bt_ref[...])
    # fl = -inf on even (no ReLU on the passthrough), 0 on odd (ReLU).
    o_ref[0] = jnp.maximum(pre, fl_ref[...]).reshape(H, W, 2 * bf)


def _fused_kernel_sN(x_ref, w21_ref, b21_ref, wd2_ref, b22_ref,
                     wd1_ref, b1a_ref, wa_ref, wb_ref, bt_ref, fl_ref,
                     o_ref, pad1_ref, pad2_ref,
                     *, stride, H, W, Hout, Wout, cin, bf):
    """stride > 1: out = shuffle(cat(branch1(x), branch2(x)), groups=2)."""
    P0, P = H * W, Hout * Wout
    x = x_ref[0]                                           # (H, W, cin)

    # branch2 head: 1x1 conv (+BN folded) + ReLU
    y = jnp.maximum(
        jnp.dot(x.reshape(P0, cin), w21_ref[...],
                preferred_element_type=jnp.float32) + b21_ref[...],
        0.0)
    # branch2: 3x3 depthwise conv, stride s (+BN folded)
    y2 = _depthwise(pad2_ref, y.reshape(H, W, bf), wd2_ref[...], b22_ref[...],
                    stride=stride, H=H, W=W, Hout=Hout, Wout=Wout)
    # branch1: 3x3 depthwise conv on x, stride s (+BN folded)
    y1 = _depthwise(pad1_ref, x, wd1_ref[...], b1a_ref[...],
                    stride=stride, H=H, W=W, Hout=Hout, Wout=Wout)

    # fused tail: both branch 1x1 convs + BN + ReLU + channel shuffle, done as
    # two matmuls with pre-interleaved weight columns (left->even, right->odd).
    pre = (jnp.dot(y1.reshape(P, cin), wa_ref[...],
                   preferred_element_type=jnp.float32)
           + jnp.dot(y2.reshape(P, bf), wb_ref[...],
                     preferred_element_type=jnp.float32)
           + bt_ref[...])
    o_ref[0] = jnp.maximum(pre, fl_ref[...]).reshape(Hout, Wout, 2 * bf)


# ----------------------------------------------------------------------------
# Wrapper: fold BN + channel shuffle into the weights, build the pallas_call
# ----------------------------------------------------------------------------
def _out_spatial(H, W, stride):
    # 3x3 conv, padding=1, stride s -> same formula as PyTorch.
    return (H - 1) // stride + 1, (W - 1) // stride + 1


def _full_spec(shape):
    return pl.BlockSpec(shape, lambda n, _r=len(shape): (0,) * _r)


def _prepare_fused_params(params, stride):
    p2 = params["branch2"]
    bf = p2["w3"].shape[1]
    neg = jnp.finfo(jnp.float32).min
    wd2 = p2["wd"] * p2["s2"]                              # dw taps * BN scale
    wb = jnp.zeros((bf, 2 * bf), jnp.float32).at[:, 1::2].set(p2["w3"] * p2["s3"])
    if stride == 1:
        # x = [x1 | x2]; select x2 in the head matmul, x1 in the tail matmul.
        w1e = jnp.concatenate(
            [jnp.zeros((bf, bf), jnp.float32), p2["w1"] * p2["s1"]], axis=0)
        wa = jnp.zeros((2 * bf, 2 * bf), jnp.float32).at[
            jnp.arange(bf), 2 * jnp.arange(bf)].set(1.0)   # x1 -> even channels
        bt = jnp.zeros((1, 2 * bf), jnp.float32).at[:, 1::2].set(p2["b3"][0])
        fl = jnp.full((1, 2 * bf), neg, jnp.float32).at[:, 1::2].set(0.0)
        args = (w1e, p2["b1"], wd2, p2["b2"], wa, wb, bt, fl)
    else:
        p1 = params["branch1"]
        cin = p1["w1"].shape[0]
        w21 = p2["w1"] * p2["s1"]
        wd1 = p1["wd"] * p1["sA"]
        wa = jnp.zeros((cin, 2 * bf), jnp.float32).at[:, 0::2].set(
            p1["w1"] * p1["sB"])                           # branch1 -> even
        bt = (jnp.zeros((1, 2 * bf), jnp.float32)
              .at[:, 0::2].set(p1["bB"][0])
              .at[:, 1::2].set(p2["b3"][0]))
        fl = jnp.zeros((1, 2 * bf), jnp.float32)           # ReLU everywhere
        args = (w21, p2["b1"], wd2, p2["b2"], wd1, p1["bA"], wa, wb, bt, fl)
    return bf, args


def inverted_residual_forward(x_nchw, params, stride):
    x = jnp.transpose(x_nchw, (0, 2, 3, 1)).astype(jnp.float32)   # NHWC
    N, H, W, cin = x.shape
    Hout, Wout = _out_spatial(H, W, stride)
    bf, args = _prepare_fused_params(params, stride)
    cout = 2 * bf

    x_spec = pl.BlockSpec((1, H, W, cin), lambda n: (n, 0, 0, 0))
    o_spec = pl.BlockSpec((1, Hout, Wout, cout), lambda n: (n, 0, 0, 0))
    param_specs = [_full_spec(a.shape) for a in args]

    if stride == 1:
        kernel = functools.partial(_fused_kernel_s1, H=H, W=W, bf=bf)
        scratch = [pltpu.VMEM((H + 2, W + 2, bf), jnp.float32)]
    else:
        kernel = functools.partial(_fused_kernel_sN, stride=stride, H=H, W=W,
                                   Hout=Hout, Wout=Wout, cin=cin, bf=bf)
        scratch = [pltpu.VMEM((H + 2, W + 2, cin), jnp.float32),
                   pltpu.VMEM((H + 2, W + 2, bf), jnp.float32)]

    out_nhwc = pl.pallas_call(
        kernel,
        out_shape=jax.ShapeDtypeStruct((N, Hout, Wout, cout), jnp.float32),
        grid=(N,),
        in_specs=[x_spec] + param_specs,
        out_specs=o_spec,
        scratch_shapes=scratch,
        compiler_params=pltpu.CompilerParams(dimension_semantics=("parallel",)),
    )(x, *args)
    # output is already channel-shuffled; only the layout transpose remains.
    # TODO(synk): lane-dense (1, Hout, Wout*cout) output layout and bf16 I/O are
    # further possible wins; kept f32 / NHWC blocks here for numerical parity.
    return jnp.transpose(out_nhwc, (0, 3, 1, 2))            # back to NCHW


# ----------------------------------------------------------------------------
# Pure-JAX reference (correctness check only)
# ----------------------------------------------------------------------------
def _cat_shuffle_to_nchw(left, right):
    out = jnp.concatenate([left, right], axis=-1)
    N, Ho, Wo, C = out.shape
    out = out.reshape(N, Ho, Wo, 2, C // 2)
    out = jnp.transpose(out, (0, 1, 2, 4, 3)).reshape(N, Ho, Wo, C)
    return jnp.transpose(out, (0, 3, 1, 2))


def _ref_dw(y, wd, stride):
    C = y.shape[-1]
    k = wd.reshape(3, 3, 1, C)
    return lax.conv_general_dilated(
        y, k, (stride, stride), ((1, 1), (1, 1)),
        dimension_numbers=("NHWC", "HWIO", "NHWC"), feature_group_count=C)


def _ref_branch2(x, p, stride):
    y = jnp.maximum(jnp.einsum("nhwc,cd->nhwd", x, p["w1"]) * p["s1"][0] + p["b1"][0], 0.0)
    y = _ref_dw(y, p["wd"], stride) * p["s2"][0] + p["b2"][0]
    y = jnp.maximum(jnp.einsum("nhwc,cd->nhwd", y, p["w3"]) * p["s3"][0] + p["b3"][0], 0.0)
    return y


def _ref_branch1(x, p, stride):
    y = _ref_dw(x, p["wd"], stride) * p["sA"][0] + p["bA"][0]
    y = jnp.maximum(jnp.einsum("nhwc,cd->nhwd", y, p["w1"]) * p["sB"][0] + p["bB"][0], 0.0)
    return y


def reference_forward(x_nchw, params, stride):
    x = jnp.transpose(x_nchw, (0, 2, 3, 1)).astype(jnp.float32)
    if stride == 1:
        bf = x.shape[-1] // 2
        left = x[..., :bf]
        right = _ref_branch2(x[..., bf:], params["branch2"], stride)
    else:
        left = _ref_branch1(x, params["branch1"], stride)
        right = _ref_branch2(x, params["branch2"], stride)
    return _cat_shuffle_to_nchw(left, right)


# ----------------------------------------------------------------------------
if __name__ == "__main__":
    key = jax.random.PRNGKey(0)
    kx, kp1, kp2 = jax.random.split(key, 3)

    N, inp, H, W = 2, 16, 16, 16
    x = jax.random.normal(kx, (N, inp, H, W), jnp.float32)   # NCHW, as in PyTorch

    fwd = jax.jit(inverted_residual_forward, static_argnums=2)

    # --- stride = 1 (chunk path, inp == oup) ---
    params1 = init_params(kp1, inp, inp, 1)
    out1 = jax.block_until_ready(fwd(x, params1, 1))
    ref1 = reference_forward(x, params1, 1)
    assert out1.shape == (N, inp, H, W)
    assert jnp.allclose(out1, ref1, atol=2e-4, rtol=2e-4), "stride=1 mismatch"

    # --- stride = 2 (branch1 + branch2, spatial downsample) ---
    oup = 32
    params2 = init_params(kp2, inp, oup, 2)
    out2 = jax.block_until_ready(fwd(x, params2, 2))
    ref2 = reference_forward(x, params2, 2)
    assert out2.shape == (N, oup, H // 2, W // 2)
    assert jnp.allclose(out2, ref2, atol=2e-4, rtol=2e-4), "stride=2 mismatch"

    print("KERNEL_OK")
</pallas_src>

<mosaic_0001>
module attributes {stable_mosaic.version = 11 : i64} {
  func.func @_fused_kernel_s1(%arg0: i32, %arg1: memref<1x16x16x16xf32, #tpu.memory_space<vmem>>, %arg2: memref<16x8xf32, #tpu.memory_space<vmem>>, %arg3: memref<1x8xf32, #tpu.memory_space<vmem>>, %arg4: memref<9x8xf32, #tpu.memory_space<vmem>>, %arg5: memref<1x8xf32, #tpu.memory_space<vmem>>, %arg6: memref<16x16xf32, #tpu.memory_space<vmem>>, %arg7: memref<8x16xf32, #tpu.memory_space<vmem>>, %arg8: memref<1x16xf32, #tpu.memory_space<vmem>>, %arg9: memref<1x16xf32, #tpu.memory_space<vmem>>, %arg10: memref<1x16x16x16xf32, #tpu.memory_space<vmem>>, %arg11: memref<18x18x8xf32, #tpu.memory_space<vmem>>) attributes {dimension_semantics = [#tpu.dimension_semantics<parallel>], iteration_bounds = array<i64: 2>, scalar_prefetch = 0 : i64, scratch_operands = 1 : i64, tpu.core_type = #tpu.core_type<tc>, window_params = [{transform_indices = @transform_0, window_bounds = array<i64: 1, 16, 16, 16>}, {pipeline_mode = #tpu.pipeline_mode<synchronous>, transform_indices = @transform_1, window_bounds = array<i64: 16, 8>}, {pipeline_mode = #tpu.pipeline_mode<synchronous>, transform_indices = @transform_2, window_bounds = array<i64: 1, 8>}, {pipeline_mode = #tpu.pipeline_mode<synchronous>, transform_indices = @transform_3, window_bounds = array<i64: 9, 8>}, {pipeline_mode = #tpu.pipeline_mode<synchronous>, transform_indices = @transform_4, window_bounds = array<i64: 1, 8>}, {pipeline_mode = #tpu.pipeline_mode<synchronous>, transform_indices = @transform_5, window_bounds = array<i64: 16, 16>}, {pipeline_mode = #tpu.pipeline_mode<synchronous>, transform_indices = @transform_6, window_bounds = array<i64: 8, 16>}, {pipeline_mode = #tpu.pipeline_mode<synchronous>, transform_indices = @transform_7, window_bounds = array<i64: 1, 16>}, {pipeline_mode = #tpu.pipeline_mode<synchronous>, transform_indices = @transform_8, window_bounds = array<i64: 1, 16>}, {transform_indices = @transform_9, window_bounds = array<i64: 1, 16, 16, 16>}]} {
    %c0 = arith.constant 0 : index
    %c0_0 = arith.constant 0 : index
    %c0_1 = arith.constant 0 : index
    %c0_2 = arith.constant 0 : index
    %0 = vector.load %arg1[%c0, %c0_0, %c0_1, %c0_2] : memref<1x16x16x16xf32, #tpu.memory_space<vmem>>, vector<1x16x16x16xf32>
    %1 = vector.shape_cast %0 : vector<1x16x16x16xf32> to vector<16x16x16xf32>
    %2 = vector.shape_cast %1 : vector<16x16x16xf32> to vector<256x16xf32>
    %c0_3 = arith.constant 0 : index
    %c0_4 = arith.constant 0 : index
    %3 = vector.load %arg2[%c0_3, %c0_4] : memref<16x8xf32, #tpu.memory_space<vmem>>, vector<16x8xf32>
    %cst = arith.constant dense<0.000000e+00> : vector<256x8xf32>
    %4 = tpu.matmul %2, %3, %cst {dimension_numbers = #tpu.dot_dimension_numbers<[1], [0], [0], [1], [0, 0, 1, 1], [], []>} : vector<256x16xf32>, vector<16x8xf32>, vector<256x8xf32> -> vector<256x8xf32>
    %c0_5 = arith.constant 0 : index
    %c0_6 = arith.constant 0 : index
    %5 = vector.load %arg3[%c0_5, %c0_6] : memref<1x8xf32, #tpu.memory_space<vmem>>, vector<1x8xf32>
    %6 = vector.broadcast %5 : vector<1x8xf32> to vector<256x8xf32>
    %7 = arith.addf %4, %6 : vector<256x8xf32>
    %cst_7 = arith.constant 0.000000e+00 : f32
    %8 = vector.broadcast %cst_7 : f32 to vector<256x8xf32>
    %9 = arith.maximumf %7, %8 : vector<256x8xf32>
    %10 = vector.shape_cast %9 : vector<256x8xf32> to vector<16x16x8xf32>
    %c0_8 = arith.constant 0 : index
    %c0_9 = arith.constant 0 : index
    %11 = vector.load %arg4[%c0_8, %c0_9] : memref<9x8xf32, #tpu.memory_space<vmem>>, vector<9x8xf32>
    %c0_10 = arith.constant 0 : index
    %c0_11 = arith.constant 0 : index
    %12 = vector.load %arg5[%c0_10, %c0_11] : memref<1x8xf32, #tpu.memory_space<vmem>>, vector<1x8xf32>
    %cst_12 = arith.constant 0.000000e+00 : f32
    %13 = vector.broadcast %cst_12 : f32 to vector<1x18x8xf32>
    %cst_13 = arith.constant 0.000000e+00 : f32
    %14 = vector.broadcast %cst_13 : f32 to vector<16x1x8xf32>
    %c0_14 = arith.constant 0 : index
    %c0_15 = arith.constant 0 : index
    %c0_16 = arith.constant 0 : index
    %15 = vector.load %arg11[%c0_14, %c0_15, %c0_16] : memref<18x18x8xf32, #tpu.memory_space<vmem>>, vector<1x18x8xf32>
    tpu.vector_store %arg11[%c0_14, %c0_15, %c0_16], %13 {strides = array<i32>} : memref<18x18x8xf32, #tpu.memory_space<vmem>>, vector<1x18x8xf32>,
    %c17 = arith.constant 17 : index
    %c0_17 = arith.constant 0 : index
    %c0_18 = arith.constant 0 : index
    %16 = vector.load %arg11[%c17, %c0_17, %c0_18] : memref<18x18x8xf32, #tpu.memory_space<vmem>>, vector<1x18x8xf32>
    tpu.vector_store %arg11[%c17, %c0_17, %c0_18], %13 {strides = array<i32>} : memref<18x18x8xf32, #tpu.memory_space<vmem>>, vector<1x18x8xf32>,
    %c1 = arith.constant 1 : index
    %c0_19 = arith.constant 0 : index
    %c0_20 = arith.constant 0 : index
    %17 = vector.load %arg11[%c1, %c0_19, %c0_20] : memref<18x18x8xf32, #tpu.memory_space<vmem>>, vector<16x1x8xf32>
    tpu.vector_store %arg11[%c1, %c0_19, %c0_20], %14 {strides = array<i32>} : memref<18x18x8xf32, #tpu.memory_space<vmem>>, vector<16x1x8xf32>,
    %c1_21 = arith.constant 1 : index
    %c17_22 = arith.constant 17 : index
    %c0_23 = arith.constant 0 : index
    %18 = vector.load %arg11[%c1_21, %c17_22, %c0_23] : memref<18x18x8xf32, #tpu.memory_space<vmem>>, vector<16x1x8xf32>
    tpu.vector_store %arg11[%c1_21, %c17_22, %c0_23], %14 {strides = array<i32>} : memref<18x18x8xf32, #tpu.memory_space<vmem>>, vector<16x1x8xf32>,
    %c1_24 = arith.constant 1 : index
    %c1_25 = arith.constant 1 : index
    %c0_26 = arith.constant 0 : index
    %19 = vector.load %arg11[%c1_24, %c1_25, %c0_26] : memref<18x18x8xf32, #tpu.memory_space<vmem>>, vector<16x16x8xf32>
    tpu.vector_store %arg11[%c1_24, %c1_25, %c0_26], %10 {strides = array<i32>} : memref<18x18x8xf32, #tpu.memory_space<vmem>>, vector<16x16x8xf32>,
    %cst_27 = arith.constant 0.000000e+00 : f32
    %20 = vector.broadcast %cst_27 : f32 to vector<16x16x8xf32>
    %c0_28 = arith.constant 0 : index
    %c0_29 = arith.constant 0 : index
    %c0_30 = arith.constant 0 : index
    %21 = vector.load %arg11[%c0_28, %c0_29, %c0_30] : memref<18x18x8xf32, #tpu.memory_space<vmem>>, vector<16x16x8xf32>
    %22 = vector.extract_strided_slice %11 {offsets = [0, 0], sizes = [1, 8], strides = [1, 1]} : vector<9x8xf32> to vector<1x8xf32>
    %23 = vector.shape_cast %22 : vector<1x8xf32> to vector<1x1x8xf32>
    %24 = vector.broadcast %23 : vector<1x1x8xf32> to vector<16x16x8xf32>
    %25 = arith.mulf %21, %24 : vector<16x16x8xf32>
    %26 = arith.addf %20, %25 : vector<16x16x8xf32>
    %c0_31 = arith.constant 0 : index
    %c1_32 = arith.constant 1 : index
    %c0_33 = arith.constant 0 : index
    %27 = vector.load %arg11[%c0_31, %c1_32, %c0_33] : memref<18x18x8xf32, #tpu.memory_space<vmem>>, vector<16x16x8xf32>
    %28 = vector.extract_strided_slice %11 {offsets = [1, 0], sizes = [1, 8], strides = [1, 1]} : vector<9x8xf32> to vector<1x8xf32>
    %29 = vector.shape_cast %28 : vector<1x8xf32> to vector<1x1x8xf32>
    %30 = vector.broadcast %29 : vector<1x1x8xf32> to vector<16x16x8xf32>
    %31 = arith.mulf %27, %30 : vector<16x16x8xf32>
    %32 = arith.addf %26, %31 : vector<16x16x8xf32>
    %c0_34 = arith.constant 0 : index
    %c2 = arith.constant 2 : index
    %c0_35 = arith.constant 0 : index
    %33 = vector.load %arg11[%c0_34, %c2, %c0_35] : memref<18x18x8xf32, #tpu.memory_space<vmem>>, vector<16x16x8xf32>
    %34 = vector.extract_strided_slice %11 {offsets = [2, 0], sizes = [1, 8], strides = [1, 1]} : vector<9x8xf32> to vector<1x8xf32>
    %35 = vector.shape_cast %34 : vector<1x8xf32> to vector<1x1x8xf32>
    %36 = vector.broadcast %35 : vector<1x1x8xf32> to vector<16x16x8xf32>
    %37 = arith.mulf %33, %36 : vector<16x16x8xf32>
    %38 = arith.addf %32, %37 : vector<16x16x8xf32>
    %c1_36 = arith.constant 1 : index
    %c0_37 = arith.constant 0 : index
    %c0_38 = arith.constant 0 : index
    %39 = vector.load %arg11[%c1_36, %c0_37, %c0_38] : memref<18x18x8xf32, #tpu.memory_space<vmem>>, vector<16x16x8xf32>
    %40 = vector.extract_strided_slice %11 {offsets = [3, 0], sizes = [1, 8], strides = [1, 1]} : vector<9x8xf32> to vector<1x8xf32>
    %41 = vector.shape_cast %40 : vector<1x8xf32> to vector<1x1x8xf32>
    %42 = vector.broadcast %41 : vector<1x1x8xf32> to vector<16x16x8xf32>
    %43 = arith.mulf %39, %42 : vector<16x16x8xf32>
    %44 = arith.addf %38, %43 : vector<16x16x8xf32>
    %c1_39 = arith.constant 1 : index
    %c1_40 = arith.constant 1 : index
    %c0_41 = arith.constant 0 : index
    %45 = vector.load %arg11[%c1_39, %c1_40, %c0_41] : memref<18x18x8xf32, #tpu.memory_space<vmem>>, vector<16x16x8xf32>
    %46 = vector.extract_strided_slice %11 {offsets = [4, 0], sizes = [1, 8], strides = [1, 1]} : vector<9x8xf32> to vector<1x8xf32>
    %47 = vector.shape_cast %46 : vector<1x8xf32> to vector<1x1x8xf32>
    %48 = vector.broadcast %47 : vector<1x1x8xf32> to vector<16x16x8xf32>
    %49 = arith.mulf %45, %48 : vector<16x16x8xf32>
    %50 = arith.addf %44, %49 : vector<16x16x8xf32>
    %c1_42 = arith.constant 1 : index
    %c2_43 = arith.constant 2 : index
    %c0_44 = arith.constant 0 : index
    %51 = vector.load %arg11[%c1_42, %c2_43, %c0_44] : memref<18x18x8xf32, #tpu.memory_space<vmem>>, vector<16x16x8xf32>
    %52 = vector.extract_strided_slice %11 {offsets = [5, 0], sizes = [1, 8], strides = [1, 1]} : vector<9x8xf32> to vector<1x8xf32>
    %53 = vector.shape_cast %52 : vector<1x8xf32> to vector<1x1x8xf32>
    %54 = vector.broadcast %53 : vector<1x1x8xf32> to vector<16x16x8xf32>
    %55 = arith.mulf %51, %54 : vector<16x16x8xf32>
    %56 = arith.addf %50, %55 : vector<16x16x8xf32>
    %c2_45 = arith.constant 2 : index
    %c0_46 = arith.constant 0 : index
    %c0_47 = arith.constant 0 : index
    %57 = vector.load %arg11[%c2_45, %c0_46, %c0_47] : memref<18x18x8xf32, #tpu.memory_space<vmem>>, vector<16x16x8xf32>
    %58 = vector.extract_strided_slice %11 {offsets = [6, 0], sizes = [1, 8], strides = [1, 1]} : vector<9x8xf32> to vector<1x8xf32>
    %59 = vector.shape_cast %58 : vector<1x8xf32> to vector<1x1x8xf32>
    %60 = vector.broadcast %59 : vector<1x1x8xf32> to vector<16x16x8xf32>
    %61 = arith.mulf %57, %60 : vector<16x16x8xf32>
    %62 = arith.addf %56, %61 : vector<16x16x8xf32>
    %c2_48 = arith.constant 2 : index
    %c1_49 = arith.constant 1 : index
    %c0_50 = arith.constant 0 : index
    %63 = vector.load %arg11[%c2_48, %c1_49, %c0_50] : memref<18x18x8xf32, #tpu.memory_space<vmem>>, vector<16x16x8xf32>
    %64 = vector.extract_strided_slice %11 {offsets = [7, 0], sizes = [1, 8], strides = [1, 1]} : vector<9x8xf32> to vector<1x8xf32>
    %65 = vector.shape_cast %64 : vector<1x8xf32> to vector<1x1x8xf32>
    %66 = vector.broadcast %65 : vector<1x1x8xf32> to vector<16x16x8xf32>
    %67 = arith.mulf %63, %66 : vector<16x16x8xf32>
    %68 = arith.addf %62, %67 : vector<16x16x8xf32>
    %c2_51 = arith.constant 2 : index
    %c2_52 = arith.constant 2 : index
    %c0_53 = arith.constant 0 : index
    %69 = vector.load %arg11[%c2_51, %c2_52, %c0_53] : memref<18x18x8xf32, #tpu.memory_space<vmem>>, vector<16x16x8xf32>
    %70 = vector.extract_strided_slice %11 {offsets = [8, 0], sizes = [1, 8], strides = [1, 1]} : vector<9x8xf32> to vector<1x8xf32>
    %71 = vector.shape_cast %70 : vector<1x8xf32> to vector<1x1x8xf32>
    %72 = vector.broadcast %71 : vector<1x1x8xf32> to vector<16x16x8xf32>
    %73 = arith.mulf %69, %72 : vector<16x16x8xf32>
    %74 = arith.addf %68, %73 : vector<16x16x8xf32>
    %75 = vector.shape_cast %12 : vector<1x8xf32> to vector<1x1x8xf32>
    %76 = vector.broadcast %75 : vector<1x1x8xf32> to vector<16x16x8xf32>
    %77 = arith.addf %74, %76 : vector<16x16x8xf32>
    %c0_54 = arith.constant 0 : index
    %c0_55 = arith.constant 0 : index
    %78 = vector.load %arg6[%c0_54, %c0_55] : memref<16x16xf32, #tpu.memory_space<vmem>>, vector<16x16xf32>
    %cst_56 = arith.constant dense<0.000000e+00> : vector<256x16xf32>
    %79 = tpu.matmul %2, %78, %cst_56 {dimension_numbers = #tpu.dot_dimension_numbers<[1], [0], [0], [1], [0, 0, 1, 1], [], []>} : vector<256x16xf32>, vector<16x16xf32>, vector<256x16xf32> -> vector<256x16xf32>
    %80 = vector.shape_cast %77 : vector<16x16x8xf32> to vector<256x8xf32>
    %c0_57 = arith.constant 0 : index
    %c0_58 = arith.constant 0 : index
    %81 = vector.load %arg7[%c0_57, %c0_58] : memref<8x16xf32, #tpu.memory_space<vmem>>, vector<8x16xf32>
    %cst_59 = arith.constant dense<0.000000e+00> : vector<256x16xf32>
    %82 = tpu.matmul %80, %81, %cst_59 {dimension_numbers = #tpu.dot_dimension_numbers<[1], [0], [0], [1], [0, 0, 1, 1], [], []>} : vector<256x8xf32>, vector<8x16xf32>, vector<256x16xf32> -> vector<256x16xf32>
    %83 = arith.addf %79, %82 : vector<256x16xf32>
    %c0_60 = arith.constant 0 : index
    %c0_61 = arith.constant 0 : index
    %84 = vector.load %arg8[%c0_60, %c0_61] : memref<1x16xf32, #tpu.memory_space<vmem>>, vector<1x16xf32>
    %85 = vector.broadcast %84 : vector<1x16xf32> to vector<256x16xf32>
    %86 = arith.addf %83, %85 : vector<256x16xf32>
    %c0_62 = arith.constant 0 : index
    %c0_63 = arith.constant 0 : index
    %87 = vector.load %arg9[%c0_62, %c0_63] : memref<1x16xf32, #tpu.memory_space<vmem>>, vector<1x16xf32>
    %88 = vector.broadcast %87 : vector<1x16xf32> to vector<256x16xf32>
    %89 = arith.maximumf %86, %88 : vector<256x16xf32>
    %90 = vector.shape_cast %89 : vector<256x16xf32> to vector<16x16x16xf32>
    %c0_64 = arith.constant 0 : index
    %c0_65 = arith.constant 0 : index
    %c0_66 = arith.constant 0 : index
    %c0_67 = arith.constant 0 : index
    %91 = vector.load %arg10[%c0_64, %c0_65, %c0_66, %c0_67] : memref<1x16x16x16xf32, #tpu.memory_space<vmem>>, vector<1x16x16x16xf32>
    %92 = vector.shape_cast %91 : vector<1x16x16x16xf32> to vector<16x16x16xf32>
    %93 = vector.shape_cast %90 : vector<16x16x16xf32> to vector<1x16x16x16xf32>
    tpu.vector_store %arg10[%c0_64, %c0_65, %c0_66, %c0_67], %93 {strides = array<i32>} : memref<1x16x16x16xf32, #tpu.memory_space<vmem>>, vector<1x16x16x16xf32>,
    return
  }
  func.func @transform_0(%arg0: i32) -> (i32, i32, i32, i32) {
    %c0_i32 = arith.constant 0 : i32
    %c0_i32_0 = arith.constant 0 : i32
    %c0_i32_1 = arith.constant 0 : i32
    %c0_i32_2 = arith.constant 0 : i32
    return %arg0, %c0_i32, %c0_i32_0, %c0_i32_1 : i32, i32, i32, i32
  }
  func.func @transform_1(%arg0: i32) -> (i32, i32) {
    %c0_i32 = arith.constant 0 : i32
    %c0_i32_0 = arith.constant 0 : i32
    %c0_i32_1 = arith.constant 0 : i32
    return %c0_i32, %c0_i32_0 : i32, i32
  }
  func.func @transform_2(%arg0: i32) -> (i32, i32) {
    %c0_i32 = arith.constant 0 : i32
    %c0_i32_0 = arith.constant 0 : i32
    %c0_i32_1 = arith.constant 0 : i32
    return %c0_i32, %c0_i32_0 : i32, i32
  }
  func.func @transform_3(%arg0: i32) -> (i32, i32) {
    %c0_i32 = arith.constant 0 : i32
    %c0_i32_0 = arith.constant 0 : i32
    %c0_i32_1 = arith.constant 0 : i32
    return %c0_i32, %c0_i32_0 : i32, i32
  }
  func.func @transform_4(%arg0: i32) -> (i32, i32) {
    %c0_i32 = arith.constant 0 : i32
    %c0_i32_0 = arith.constant 0 : i32
    %c0_i32_1 = arith.constant 0 : i32
    return %c0_i32, %c0_i32_0 : i32, i32
  }
  func.func @transform_5(%arg0: i32) -> (i32, i32) {
    %c0_i32 = arith.constant 0 : i32
    %c0_i32_0 = arith.constant 0 : i32
    %c0_i32_1 = arith.constant 0 : i32
    return %c0_i32, %c0_i32_0 : i32, i32
  }
  func.func @transform_6(%arg0: i32) -> (i32, i32) {
    %c0_i32 = arith.constant 0 : i32
    %c0_i32_0 = arith.constant 0 : i32
    %c0_i32_1 = arith.constant 0 : i32
    return %c0_i32, %c0_i32_0 : i32, i32
  }
  func.func @transform_7(%arg0: i32) -> (i32, i32) {
    %c0_i32 = arith.constant 0 : i32
    %c0_i32_0 = arith.constant 0 : i32
    %c0_i32_1 = arith.constant 0 : i32
    return %c0_i32, %c0_i32_0 : i32, i32
  }
  func.func @transform_8(%arg0: i32) -> (i32, i32) {
    %c0_i32 = arith.constant 0 : i32
    %c0_i32_0 = arith.constant 0 : i32
    %c0_i32_1 = arith.constant 0 : i32
    return %c0_i32, %c0_i32_0 : i32, i32
  }
  func.func @transform_9(%arg0: i32) -> (i32, i32, i32, i32) {
    %c0_i32 = arith.constant 0 : i32
    %c0_i32_0 = arith.constant 0 : i32
    %c0_i32_1 = arith.constant 0 : i32
    %c0_i32_2 = arith.constant 0 : i32
    return %arg0, %c0_i32, %c0_i32_0, %c0_i32_1 : i32, i32, i32, i32
  }
}

</mosaic_0001>

<llo_original>
// kernel: inverted_residual_forward.1
$region0: #{inverted_residual_forward.1}
  #allocation0 [shape = 'u32[]', space=smem, size = 0x4, offset = 0x4, fixed_abs, tag = 'smem constant byte address 0x4 - core index']
  #allocation1 [shape = 'u32[144,128]{1,0:T(1,128)}', space=vmem, size = 0x12000, scoped, tag = 'internal scratch']
  #allocation2 [shape = 'f32[18,18,8]{2,1,0:T(8,128)}', space=vmem, size = 0x36000, scoped, tag = 'scratch operand']
  %s0 = inlined_call_operand.vmem [shape: f32[2,16,16,16], index: 0, kind: input, shape index: {}]
  %s1 = inlined_call_operand.vmem [shape: f32[16,8], index: 1, kind: input, shape index: {}]
  %s2 = inlined_call_operand.vmem [shape: f32[1,8], index: 2, kind: input, shape index: {}]
  %s3 = inlined_call_operand.vmem [shape: f32[9,8], index: 3, kind: input, shape index: {}]
  %s4 = inlined_call_operand.vmem [shape: f32[1,8], index: 4, kind: input, shape index: {}]
  %s5 = inlined_call_operand.vmem [shape: f32[16,16], index: 5, kind: input, shape index: {}]
  %s6 = inlined_call_operand.vmem [shape: f32[8,16], index: 6, kind: input, shape index: {}]
  %s7 = inlined_call_operand.vmem [shape: f32[1,16], index: 7, kind: input, shape index: {}]
  %s8 = inlined_call_operand.vmem [shape: f32[1,16], index: 8, kind: input, shape index: {}]
  %s9 = inlined_call_operand.vmem [shape: f32[2,16,16,16], index: 9, kind: output, shape index: {}]
  %s10 = sld [smem:[#allocation0]]
  $region69: #{inverted_residual_forward.1} parent=0
    _
  %s12 = ssub.s32 1, %s10
  %s13 = scalar_select 0, %s12, %s10
  loop: start=0, step=1, limit=4
  $region2: #{inverted_residual_forward.1} parent=0 // loop_pre_header
    _
  $region3: #{inverted_residual_forward.1} parent=0 // loop_header
    %s15 = sphi 0, %s19
    %p16 = scmp.ge.s32.totalorder %s15, 4
    %s25 = sphi 0, %s27
    %s28 = sphi 0, %s25
    %s29 = sphi 0, %s28
    %s45 = sphi 0, %s29
    %s49 = sphi 0, %s49
    %s51 = sphi 0, %s49
    %s52 = sphi 0, %s51
    %s66 = sphi 0, %s52
    %s70 = sphi 0, %s70
    %s72 = sphi 0, %s70
    %s73 = sphi 0, %s72
    %s87 = sphi 0, %s73
    %s91 = sphi 0, %s91
    %s93 = sphi 0, %s91
    %s94 = sphi 0, %s93
    %s108 = sphi 0, %s94
    %s112 = sphi 0, %s112
    %s114 = sphi 0, %s112
    %s115 = sphi 0, %s114
    %s129 = sphi 0, %s115
    %s133 = sphi 0, %s133
    %s135 = sphi 0, %s133
    %s136 = sphi 0, %s135
    %s150 = sphi 0, %s136
    %s154 = sphi 0, %s154
    %s156 = sphi 0, %s154
    %s157 = sphi 0, %s156
    %s171 = sphi 0, %s157
    %s175 = sphi 0, %s175
    %s177 = sphi 0, %s175
    %s178 = sphi 0, %s177
    %s192 = sphi 0, %s178
    %s196 = sphi 0, %s196
    %s198 = sphi 0, %s196
    %s199 = sphi 0, %s198
    %s213 = sphi 0, %s199
    %s219 = sphi 0, %s221
    %s222 = sphi 0, %s219
    %s223 = sphi 0, %s222
    %s239 = sphi 0, %s223
  $region4: #{inverted_residual_forward.1} parent=0 // loop_header_branch
    %18 = sbr.rel (%p16) target = $region8
  $region5: #{inverted_residual_forward.1} parent=0 // loop_body
    %s20 = ssub.s32 %s15, 1
    %s21 = ssub.s32 %s15, 2
    %s22 = sadd.s32 %s15, 1
    %s23 = ssub.s32 %s15, %s22
    %p24 = scmp.eq.s32.totalorder %s23, 0
    %s26 = sadd.s32 %s25, 1
    %s27 = scalar_select %p24, %s25, %s26
    %p30 = pneg %p24
    %p31 = scmp.eq.s32.totalorder %s15, 1
    %p32 = por %p30, %p31
    %p33 = scmp.ne.s32.totalorder %s25, %s28
    %p34 = scmp.eq.s32.totalorder %s15, 0
    %p35 = por %p33, %p34
    %p36 = scmp.ne.s32.totalorder %s25, %s28
    %p37 = scmp.eq.s32.totalorder %s20, 1
    %p38 = por %p36, %p37
    %p39 = scmp.ne.s32.totalorder %s28, %s29
    %p40 = scmp.eq.s32.totalorder %s20, 0
    %p41 = por %p39, %p40
    %p42 = scmp.ne.s32.totalorder %s28, %s29
    %p43 = scmp.eq.s32.totalorder %s21, 1
    %p44 = por %p42, %p43
    %p46 = scmp.ne.s32.totalorder %s29, %s45
    %p47 = scmp.eq.s32.totalorder %s21, 0
    %p48 = por %p46, %p47
    %s50 = sadd.s32 %s49, 1
    %p53 = scmp.eq.s32.totalorder %s15, 1
    %p54 = scmp.ne.s32.totalorder %s49, %s51
    %p55 = scmp.eq.s32.totalorder %s15, 0
    %p56 = por %p54, %p55
    %p57 = scmp.ne.s32.totalorder %s49, %s51
    %p58 = scmp.eq.s32.totalorder %s20, 1
    %p59 = por %p57, %p58
    %p60 = scmp.ne.s32.totalorder %s51, %s52
    %p61 = scmp.eq.s32.totalorder %s20, 0
    %p62 = por %p60, %p61
    %p63 = scmp.ne.s32.totalorder %s51, %s52
    %p64 = scmp.eq.s32.totalorder %s21, 1
    %p65 = por %p63, %p64
    %p67 = scmp.ne.s32.totalorder %s52, %s66
    %p68 = scmp.eq.s32.totalorder %s21, 0
    %p69 = por %p67, %p68
    %s71 = sadd.s32 %s70, 1
    %p74 = scmp.eq.s32.totalorder %s15, 1
    %p75 = scmp.ne.s32.totalorder %s70, %s72
    %p76 = scmp.eq.s32.totalorder %s15, 0
    %p77 = por %p75, %p76
    %p78 = scmp.ne.s32.totalorder %s70, %s72
    %p79 = scmp.eq.s32.totalorder %s20, 1
    %p80 = por %p78, %p79
    %p81 = scmp.ne.s32.totalorder %s72, %s73
    %p82 = scmp.eq.s32.totalorder %s20, 0
    %p83 = por %p81, %p82
    %p84 = scmp.ne.s32.totalorder %s72, %s73
    %p85 = scmp.eq.s32.totalorder %s21, 1
    %p86 = por %p84, %p85
    %p88 = scmp.ne.s32.totalorder %s73, %s87
    %p89 = scmp.eq.s32.totalorder %s21, 0
    %p90 = por %p88, %p89
    %s92 = sadd.s32 %s91, 1
    %p95 = scmp.eq.s32.totalorder %s15, 1
    %p96 = scmp.ne.s32.totalorder %s91, %s93
    %p97 = scmp.eq.s32.totalorder %s15, 0
    %p98 = por %p96, %p97
    %p99 = scmp.ne.s32.totalorder %s91, %s93
    %p100 = scmp.eq.s32.totalorder %s20, 1
    %p101 = por %p99, %p100
    %p102 = scmp.ne.s32.totalorder %s93, %s94
    %p103 = scmp.eq.s32.totalorder %s20, 0
    %p104 = por %p102, %p103
    %p105 = scmp.ne.s32.totalorder %s93, %s94
    %p106 = scmp.eq.s32.totalorder %s21, 1
    %p107 = por %p105, %p106
    %p109 = scmp.ne.s32.totalorder %s94, %s108
    %p110 = scmp.eq.s32.totalorder %s21, 0
    %p111 = por %p109, %p110
    %s113 = sadd.s32 %s112, 1
    %p116 = scmp.eq.s32.totalorder %s15, 1
    %p117 = scmp.ne.s32.totalorder %s112, %s114
    %p118 = scmp.eq.s32.totalorder %s15, 0
    %p119 = por %p117, %p118
    %p120 = scmp.ne.s32.totalorder %s112, %s114
    %p121 = scmp.eq.s32.totalorder %s20, 1
    %p122 = por %p120, %p121
    %p123 = scmp.ne.s32.totalorder %s114, %s115
    %p124 = scmp.eq.s32.totalorder %s20, 0
    %p125 = por %p123, %p124
    %p126 = scmp.ne.s32.totalorder %s114, %s115
    %p127 = scmp.eq.s32.totalorder %s21, 1
    %p128 = por %p126, %p127
    %p130 = scmp.ne.s32.totalorder %s115, %s129
    %p131 = scmp.eq.s32.totalorder %s21, 0
    %p132 = por %p130, %p131
    %s134 = sadd.s32 %s133, 1
    %p137 = scmp.eq.s32.totalorder %s15, 1
    %p138 = scmp.ne.s32.totalorder %s133, %s135
    %p139 = scmp.eq.s32.totalorder %s15, 0
    %p140 = por %p138, %p139
    %p141 = scmp.ne.s32.totalorder %s133, %s135
    %p142 = scmp.eq.s32.totalorder %s20, 1
    %p143 = por %p141, %p142
    %p144 = scmp.ne.s32.totalorder %s135, %s136
    %p145 = scmp.eq.s32.totalorder %s20, 0
    %p146 = por %p144, %p145
    %p147 = scmp.ne.s32.totalorder %s135, %s136
    %p148 = scmp.eq.s32.totalorder %s21, 1
    %p149 = por %p147, %p148
    %p151 = scmp.ne.s32.totalorder %s136, %s150
    %p152 = scmp.eq.s32.totalorder %s21, 0
    %p153 = por %p151, %p152
    %s155 = sadd.s32 %s154, 1
    %p158 = scmp.eq.s32.totalorder %s15, 1
    %p159 = scmp.ne.s32.totalorder %s154, %s156
    %p160 = scmp.eq.s32.totalorder %s15, 0
    %p161 = por %p159, %p160
    %p162 = scmp.ne.s32.totalorder %s154, %s156
    %p163 = scmp.eq.s32.totalorder %s20, 1
    %p164 = por %p162, %p163
    %p165 = scmp.ne.s32.totalorder %s156, %s157
    %p166 = scmp.eq.s32.totalorder %s20, 0
    %p167 = por %p165, %p166
    %p168 = scmp.ne.s32.totalorder %s156, %s157
    %p169 = scmp.eq.s32.totalorder %s21, 1
    %p170 = por %p168, %p169
    %p172 = scmp.ne.s32.totalorder %s157, %s171
    %p173 = scmp.eq.s32.totalorder %s21, 0
    %p174 = por %p172, %p173
    %s176 = sadd.s32 %s175, 1
    %p179 = scmp.eq.s32.totalorder %s15, 1
    %p180 = scmp.ne.s32.totalorder %s175, %s177
    %p181 = scmp.eq.s32.totalorder %s15, 0
    %p182 = por %p180, %p181
    %p183 = scmp.ne.s32.totalorder %s175, %s177
    %p184 = scmp.eq.s32.totalorder %s20, 1
    %p185 = por %p183, %p184
    %p186 = scmp.ne.s32.totalorder %s177, %s178
    %p187 = scmp.eq.s32.totalorder %s20, 0
    %p188 = por %p186, %p187
    %p189 = scmp.ne.s32.totalorder %s177, %s178
    %p190 = scmp.eq.s32.totalorder %s21, 1
    %p191 = por %p189, %p190
    %p193 = scmp.ne.s32.totalorder %s178, %s192
    %p194 = scmp.eq.s32.totalorder %s21, 0
    %p195 = por %p193, %p194
    %s197 = sadd.s32 %s196, 1
    %p200 = scmp.eq.s32.totalorder %s15, 1
    %p201 = scmp.ne.s32.totalorder %s196, %s198
    %p202 = scmp.eq.s32.totalorder %s15, 0
    %p203 = por %p201, %p202
    %p204 = scmp.ne.s32.totalorder %s196, %s198
    %p205 = scmp.eq.s32.totalorder %s20, 1
    %p206 = por %p204, %p205
    %p207 = scmp.ne.s32.totalorder %s198, %s199
    %p208 = scmp.eq.s32.totalorder %s20, 0
    %p209 = por %p207, %p208
    %p210 = scmp.ne.s32.totalorder %s198, %s199
    %p211 = scmp.eq.s32.totalorder %s21, 1
    %p212 = por %p210, %p211
    %p214 = scmp.ne.s32.totalorder %s199, %s213
    %p215 = scmp.eq.s32.totalorder %s21, 0
    %p216 = por %p214, %p215
    %s217 = ssub.s32 %s15, %s22
    %p218 = scmp.eq.s32.totalorder %s217, 0
    %s220 = sadd.s32 %s219, 1
    %s221 = scalar_select %p218, %s219, %s220
    %p224 = pneg %p218
    %p225 = scmp.eq.s32.totalorder %s15, 1
    %p226 = por %p224, %p225
    %p227 = scmp.ne.s32.totalorder %s219, %s222
    %p228 = scmp.eq.s32.totalorder %s15, 0
    %p229 = por %p227, %p228
    %p230 = scmp.ne.s32.totalorder %s219, %s222
    %p231 = scmp.eq.s32.totalorder %s20, 1
    %p232 = por %p230, %p231
    %p233 = scmp.ne.s32.totalorder %s222, %s223
    %p234 = scmp.eq.s32.totalorder %s20, 0
    %p235 = por %p233, %p234
    %p236 = scmp.ne.s32.totalorder %s222, %s223
    %p237 = scmp.eq.s32.totalorder %s21, 1
    %p238 = por %p236, %p237
    %p240 = scmp.ne.s32.totalorder %s223, %s239
    %p241 = scmp.eq.s32.totalorder %s21, 0
    %p242 = por %p240, %p241
    %p243 = scmp.le.s32.totalorder 1, %s15
    %p244 = scmp.lt.s32.totalorder %s15, 3
    %p245 = pnand %p243, %p244
    %p246 = pneg %p245
    // Predicated region
    $region9: #{inverted_residual_forward.1} parent=5 // pred_check
      _
    $region10: #{inverted_residual_forward.1} parent=5 // pred_check_branch
      %248 = sbr.rel (%p245) target = $region12
    $region11: #{inverted_residual_forward.1} parent=5 // pred_region
      %s249 = ssub.s32 %s15, 1
      // Predicated region
      $region13: #{inverted_residual_forward.1} parent=11 // pred_check
        %p250 = pneg %p62
      $region14: #{inverted_residual_forward.1} parent=11 // pred_check_branch
        %252 = sbr.rel (%p250) target = $region16
      $region15: #{inverted_residual_forward.1} parent=11 // pred_region
        _
      $region16: #{inverted_residual_forward.1} parent=11 // pred_fallthru
        _
      // Predicated region
      $region17: #{inverted_residual_forward.1} parent=11 // pred_check
        %p253 = pneg %p83
      $region18: #{inverted_residual_forward.1} parent=11 // pred_check_branch
        %255 = sbr.rel (%p253) target = $region20
      $region19: #{inverted_residual_forward.1} parent=11 // pred_region
        _
      $region20: #{inverted_residual_forward.1} parent=11 // pred_fallthru
        _
      // Predicated region
      $region21: #{inverted_residual_forward.1} parent=11 // pred_check
        %p256 = pneg %p104
      $region22: #{inverted_residual_forward.1} parent=11 // pred_check_branch
        %258 = sbr.rel (%p256) target = $region24
      $region23: #{inverted_residual_forward.1} parent=11 // pred_region
        _
      $region24: #{inverted_residual_forward.1} parent=11 // pred_fallthru
        _
      // Predicated region
      $region25: #{inverted_residual_forward.1} parent=11 // pred_check
        %p259 = pneg %p125
      $region26: #{inverted_residual_forward.1} parent=11 // pred_check_branch
        %261 = sbr.rel (%p259) target = $region28
      $region27: #{inverted_residual_forward.1} parent=11 // pred_region
        _
      $region28: #{inverted_residual_forward.1} parent=11 // pred_fallthru
        _
      // Predicated region
      $region29: #{inverted_residual_forward.1} parent=11 // pred_check
        %p262 = pneg %p146
      $region30: #{inverted_residual_forward.1} parent=11 // pred_check_branch
        %264 = sbr.rel (%p262) target = $region32
      $region31: #{inverted_residual_forward.1} parent=11 // pred_region
        _
      $region32: #{inverted_residual_forward.1} parent=11 // pred_fallthru
        _
      // Predicated region
      $region33: #{inverted_residual_forward.1} parent=11 // pred_check
        %p265 = pneg %p167
      $region34: #{inverted_residual_forward.1} parent=11 // pred_check_branch
        %267 = sbr.rel (%p265) target = $region36
      $region35: #{inverted_residual_forward.1} parent=11 // pred_region
        _
      $region36: #{inverted_residual_forward.1} parent=11 // pred_fallthru
        _
      // Predicated region
      $region37: #{inverted_residual_forward.1} parent=11 // pred_check
        %p268 = pneg %p188
      $region38: #{inverted_residual_forward.1} parent=11 // pred_check_branch
        %270 = sbr.rel (%p268) target = $region40
      $region39: #{inverted_residual_forward.1} parent=11 // pred_region
        _
      $region40: #{inverted_residual_forward.1} parent=11 // pred_fallthru
        _
      // Predicated region
      $region41: #{inverted_residual_forward.1} parent=11 // pred_check
        %p271 = pneg %p209
      $region42: #{inverted_residual_forward.1} parent=11 // pred_check_branch
        %273 = sbr.rel (%p271) target = $region44
      $region43: #{inverted_residual_forward.1} parent=11 // pred_region
        _
      $region44: #{inverted_residual_forward.1} parent=11 // pred_fallthru
        _
    $region12: #{inverted_residual_forward.1} parent=5 // pred_fallthru
      _
    %p274 = scmp.lt.s32.totalorder %s15, 2
    // Predicated region
    $region45: #{inverted_residual_forward.1} parent=5 // pred_check
      %p275 = pneg %p274
    $region46: #{inverted_residual_forward.1} parent=5 // pred_check_branch
      %277 = sbr.rel (%p275) target = $region48
    $region47: #{inverted_residual_forward.1} parent=5 // pred_region
      // Predicated region
      $region49: #{inverted_residual_forward.1} parent=47 // pred_check
        %p278 = pneg %p35
      $region50: #{inverted_residual_forward.1} parent=47 // pred_check_branch
        %280 = sbr.rel (%p278) target = $region52
      $region51: #{inverted_residual_forward.1} parent=47 // pred_region
        %p281 = scmp.lt.s32.totalorder %s15, 1
        %s282 = scalar_select %p281, %s15, 1
        %s283 = smul.addr %s282, 32
        %s284 = smul.addr %s283, 8
        %s285 = scalar_lea.vmem %s0, %s284
      $region52: #{inverted_residual_forward.1} parent=47 // pred_fallthru
        _
    $region48: #{inverted_residual_forward.1} parent=5 // pred_fallthru
      _
    %p286 = scmp.le.s32.totalorder 1, %s15
    %p287 = scmp.lt.s32.totalorder %s15, 3
    %p288 = pnand %p286, %p287
    %p289 = pneg %p288
    // Predicated region
    $region53: #{inverted_residual_forward.1} parent=5 // pred_check
      _
    $region54: #{inverted_residual_forward.1} parent=5 // pred_check_branch
      %291 = sbr.rel (%p288) target = $region56
    $region55: #{inverted_residual_forward.1} parent=5 // pred_region
      %s292 = ssub.s32 %s15, 1
      %p293 = scmp.lt.s32.totalorder %s20, 1
      %s294 = scalar_select %p293, %s20, 1
      %s295 = smul.addr %s294, 32
      %s296 = smul.addr %s295, 8
      %s297 = scalar_lea.vmem %s0, %s296
      %p298 = pneg %p41
      %p299 = pneg %p38
      %p300 = pneg %p62
      %p301 = pneg %p59
      %p302 = pneg %p83
      %p303 = pneg %p80
      %p304 = pneg %p104
      %p305 = pneg %p101
      %p306 = pneg %p125
      %p307 = pneg %p122
      %p308 = pneg %p146
      %p309 = pneg %p143
      %p310 = pneg %p167
      %p311 = pneg %p164
      %p312 = pneg %p188
      %p313 = pneg %p185
      %p314 = pneg %p209
      %p315 = pneg %p206
      %p316 = pneg %p235
      %p317 = pneg %p232
      %p318 = scmp.lt.s32.totalorder %s20, 1
      %s319 = scalar_select %p318, %s20, 1
      %s320 = smul.addr %s319, 32
      %s321 = smul.addr %s320, 8
      %s322 = scalar_lea.vmem %s9, %s321
      %p323 = scmp.lt.s32.totalorder %s20, 1
      %s324 = scalar_select %p323, %s20, 1
      %s325 = smul.addr %s324, 32
      %s326 = smul.addr %s325, 8
      %s327 = scalar_lea.vmem %s0, %s326
      %p328 = scmp.lt.s32.totalorder %s20, 1
      %s329 = scalar_select %p328, %s20, 1
      %s330 = smul.addr %s329, 32
      %s331 = smul.addr %s330, 8
      %s332 = scalar_lea.vmem %s9, %s331
      %v333 = vld [vmem:[%s327] sm:$0xff]
      %v334 = vld [vmem:[%s327 + $0x8] sm:$0xff]
      %v335 = vld [vmem:[%s327 + $0x10] sm:$0xff]
      %v336 = vld [vmem:[%s327 + $0x18] sm:$0xff]
      %v337 = vld [vmem:[%s327 + $0x20] sm:$0xff]
      %v338 = vld [vmem:[%s327 + $0x28] sm:$0xff]
      %v339 = vld [vmem:[%s327 + $0x30] sm:$0xff]
      %v340 = vld [vmem:[%s327 + $0x38] sm:$0xff]
      %v341 = vld [vmem:[%s327 + $0x40] sm:$0xff]
      %v342 = vld [vmem:[%s327 + $0x48] sm:$0xff]
      %v343 = vld [vmem:[%s327 + $0x50] sm:$0xff]
      %v344 = vld [vmem:[%s327 + $0x58] sm:$0xff]
      %v345 = vld [vmem:[%s327 + $0x60] sm:$0xff]
      %v346 = vld [vmem:[%s327 + $0x68] sm:$0xff]
      %v347 = vld [vmem:[%s327 + $0x70] sm:$0xff]
      %v348 = vld [vmem:[%s327 + $0x78] sm:$0xff]
      %v349 = vld [vmem:[%s327 + $0x80] sm:$0xff]
      %v350 = vld [vmem:[%s327 + $0x88] sm:$0xff]
      %v351 = vld [vmem:[%s327 + $0x90] sm:$0xff]
      %v352 = vld [vmem:[%s327 + $0x98] sm:$0xff]
      %v353 = vld [vmem:[%s327 + $0xa0] sm:$0xff]
      %v354 = vld [vmem:[%s327 + $0xa8] sm:$0xff]
      %v355 = vld [vmem:[%s327 + $0xb0] sm:$0xff]
      %v356 = vld [vmem:[%s327 + $0xb8] sm:$0xff]
      %v357 = vld [vmem:[%s327 + $0xc0] sm:$0xff]
      %v358 = vld [vmem:[%s327 + $0xc8] sm:$0xff]
      %v359 = vld [vmem:[%s327 + $0xd0] sm:$0xff]
      %v360 = vld [vmem:[%s327 + $0xd8] sm:$0xff]
      %v361 = vld [vmem:[%s327 + $0xe0] sm:$0xff]
      %v362 = vld [vmem:[%s327 + $0xe8] sm:$0xff]
      %v363 = vld [vmem:[%s327 + $0xf0] sm:$0xff]
      %v364 = vld [vmem:[%s327 + $0xf8] sm:$0xff]
      %v365 = vld [vmem:[%s1] sm:$0xff]
      %v366 = vld [vmem:[%s1 + $0x8] sm:$0xff]
      %v367 = vld [vmem:[%s2] sm:$0x1]
      %v369 = vlaneseq
      %v370 = vshrl.u32 %v369, 7
      %v371 = vsub.s32 0, %v370
      %v372 = vrot.slane %v367, %v371
      %vm374 = vcmask 130048
      %v376 = vsel %vm374, %v333, 0
      %v379 = vsel %vm374, %v334, 0
      %v382 = vsel %vm374, %v335, 0
      %v385 = vsel %vm374, %v336, 0
      %v388 = vsel %vm374, %v337, 0
      %v391 = vsel %vm374, %v338, 0
      %v394 = vsel %vm374, %v339, 0
      %v397 = vsel %vm374, %v340, 0
      %v400 = vsel %vm374, %v341, 0
      %v403 = vsel %vm374, %v342, 0
      %v406 = vsel %vm374, %v343, 0
      %v409 = vsel %vm374, %v344, 0
      %v412 = vsel %vm374, %v345, 0
      %v415 = vsel %vm374, %v346, 0
      %v418 = vsel %vm374, %v347, 0
      %v421 = vsel %vm374, %v348, 0
      %v424 = vsel %vm374, %v349, 0
      %v427 = vsel %vm374, %v350, 0
      %v430 = vsel %vm374, %v351, 0
      %v433 = vsel %vm374, %v352, 0
      %v436 = vsel %vm374, %v353, 0
      %v439 = vsel %vm374, %v354, 0
      %v442 = vsel %vm374, %v355, 0
      %v445 = vsel %vm374, %v356, 0
      %v448 = vsel %vm374, %v357, 0
      %v451 = vsel %vm374, %v358, 0
      %v454 = vsel %vm374, %v359, 0
      %v457 = vsel %vm374, %v360, 0
      %v460 = vsel %vm374, %v361, 0
      %v463 = vsel %vm374, %v362, 0
      %v466 = vsel %vm374, %v363, 0
      %v469 = vsel %vm374, %v364, 0
      %471 = vmatprep.subr.mxu0 0.0
      %472 = vmatpush1.msra.mxu0 %v365
      %473 = vmatprep.subr.mxu0 0.0
      %474 = vmatpush1.msra.mxu0 %v366
      %475 = vmatprep.subr.mxu0 0.0
      %476 = vmatpush1.msra.mxu0 0.0
      %477 = vmatprep.subr.mxu0 0.0
      %478 = vmatpush1.msra.mxu0 0.0
      %479 = vmatprep.subr.mxu0 0.0
      %480 = vmatpush1.msra.mxu0 0.0
      %481 = vmatprep.subr.mxu0 0.0
      %482 = vmatpush1.msra.mxu0 0.0
      %483 = vmatprep.subr.mxu0 0.0
      %484 = vmatpush1.msra.mxu0 0.0
      %485 = vmatprep.subr.mxu0 0.0
      %486 = vmatpush1.msra.mxu0 0.0
      %487 = vmatprep.subr.mxu0 0.0
      %488 = vmatpush1.msra.mxu0 0.0
      %489 = vmatprep.subr.mxu0 0.0
      %490 = vmatpush1.msra.mxu0 0.0
      %491 = vmatprep.subr.mxu0 0.0
      %492 = vmatpush1.msra.mxu0 0.0
      %493 = vmatprep.subr.mxu0 0.0
      %494 = vmatpush1.msra.mxu0 0.0
      %495 = vmatprep.subr.mxu0 0.0
      %496 = vmatpush1.msra.mxu0 0.0
      %497 = vmatprep.subr.mxu0 0.0
      %498 = vmatpush1.msra.mxu0 0.0
      %499 = vmatprep.subr.mxu0 0.0
      %500 = vmatpush1.msra.mxu0 0.0
      %501 = vmatprep.subr.mxu0 0.0
      %502 = vmatpush1.msra.mxu0 0.0
      %503 = vmatprep.subr.mxu0 0.0
      %504 = vmatpush1.msra.mxu0 0.0
      %505 = vmatprep.subr.mxu0 0.0
      %506 = vmatpush1.msra.mxu0 0.0
      %507 = vmatprep.subr.mxu0 0.0
      %508 = vmatpush1.msra.mxu0 0.0
      %509 = vmatprep.subr.mxu0 0.0
      %510 = vmatpush1.msra.mxu0 0.0
      %511 = vmatprep.subr.mxu0 0.0
      %512 = vmatpush1.msra.mxu0 0.0
      %513 = vmatprep.subr.mxu0 0.0
      %514 = vmatpush1.msra.mxu0 0.0
      %515 = vmatprep.subr.mxu0 0.0
      %516 = vmatpush1.msra.mxu0 0.0
      %517 = vmatprep.subr.mxu0 0.0
      %518 = vmatpush1.msra.mxu0 0.0
      %519 = vmatprep.subr.mxu0 0.0
      %520 = vmatpush1.msra.mxu0 0.0
      %521 = vmatprep.subr.mxu0 0.0
      %522 = vmatpush1.msra.mxu0 0.0
      %523 = vmatprep.subr.mxu0 0.0
      %524 = vmatpush1.msra.mxu0 0.0
      %525 = vmatprep.subr.mxu0 0.0
      %526 = vmatpush1.msra.mxu0 0.0
      %527 = vmatprep.subr.mxu0 0.0
      %528 = vmatpush1.msra.mxu0 0.0
      %529 = vmatprep.subr.mxu0 0.0
      %530 = vmatpush1.msra.mxu0 0.0
      %531 = vmatprep.subr.mxu0 0.0
      %532 = vmatpush1.msra.mxu0 0.0
      %533 = vmatprep.subr.mxu0 0.0
      %534 = vmatpush1.msra.mxu0 0.0
      %535 = vmatprep.mubr.f32.mxu0 0.0
      %536 = vmatmul.mubr.f32.gmra.mrb[0].mxu0 %v376
      %v537 = vpop.f32.mrb[0].mxu0
      %v538 = vadd.f32 %v372, %v537
      %v539 = vpop.f32.mrb[0].mxu0
      %540 = vmatprep.mubr.f32.mxu0 0.0
      %541 = vmatmul.mubr.f32.gmra.mrb[0].mxu0 %v379
      %v542 = vpop.f32.mrb[0].mxu0
      %v543 = vadd.f32 %v372, %v542
      %v544 = vpop.f32.mrb[0].mxu0
      %545 = vmatprep.mubr.f32.mxu0 0.0
      %546 = vmatmul.mubr.f32.gmra.mrb[0].mxu0 %v382
      %v547 = vpop.f32.mrb[0].mxu0
      %v548 = vadd.f32 %v372, %v547
      %v549 = vpop.f32.mrb[0].mxu0
      %550 = vmatprep.mubr.f32.mxu0 0.0
      %551 = vmatmul.mubr.f32.gmra.mrb[0].mxu0 %v385
      %v552 = vpop.f32.mrb[0].mxu0
      %v553 = vadd.f32 %v372, %v552
      %v554 = vpop.f32.mrb[0].mxu0
      %555 = vmatprep.mubr.f32.mxu0 0.0
      %556 = vmatmul.mubr.f32.gmra.mrb[0].mxu0 %v388
      %v557 = vpop.f32.mrb[0].mxu0
      %v558 = vadd.f32 %v372, %v557
      %v559 = vpop.f32.mrb[0].mxu0
      %560 = vmatprep.mubr.f32.mxu0 0.0
      %561 = vmatmul.mubr.f32.gmra.mrb[0].mxu0 %v391
      %v562 = vpop.f32.mrb[0].mxu0
      %v563 = vadd.f32 %v372, %v562
      %v564 = vpop.f32.mrb[0].mxu0
      %565 = vmatprep.mubr.f32.mxu0 0.0
      %566 = vmatmul.mubr.f32.gmra.mrb[0].mxu0 %v394
      %v567 = vpop.f32.mrb[0].mxu0
      %v568 = vadd.f32 %v372, %v567
      %v569 = vpop.f32.mrb[0].mxu0
      %570 = vmatprep.mubr.f32.mxu0 0.0
      %571 = vmatmul.mubr.f32.gmra.mrb[0].mxu0 %v397
      %v572 = vpop.f32.mrb[0].mxu0
      %v573 = vadd.f32 %v372, %v572
      %v574 = vpop.f32.mrb[0].mxu0
      %575 = vmatprep.mubr.f32.mxu0 0.0
      %576 = vmatmul.mubr.f32.gmra.mrb[0].mxu0 %v400
      %v577 = vpop.f32.mrb[0].mxu0
      %v578 = vadd.f32 %v372, %v577
      %v579 = vpop.f32.mrb[0].mxu0
      %580 = vmatprep.mubr.f32.mxu0 0.0
      %581 = vmatmul.mubr.f32.gmra.mrb[0].mxu0 %v403
      %v582 = vpop.f32.mrb[0].mxu0
      %v583 = vadd.f32 %v372, %v582
      %v584 = vpop.f32.mrb[0].mxu0
      %585 = vmatprep.mubr.f32.mxu0 0.0
      %586 = vmatmul.mubr.f32.gmra.mrb[0].mxu0 %v406
      %v587 = vpop.f32.mrb[0].mxu0
      %v588 = vadd.f32 %v372, %v587
      %v589 = vpop.f32.mrb[0].mxu0
      %590 = vmatprep.mubr.f32.mxu0 0.0
      %591 = vmatmul.mubr.f32.gmra.mrb[0].mxu0 %v409
      %v592 = vpop.f32.mrb[0].mxu0
      %v593 = vadd.f32 %v372, %v592
      %v594 = vpop.f32.mrb[0].mxu0
      %595 = vmatprep.mubr.f32.mxu0 0.0
      %596 = vmatmul.mubr.f32.gmra.mrb[0].mxu0 %v412
      %v597 = vpop.f32.mrb[0].mxu0
      %v598 = vadd.f32 %v372, %v597
      %v599 = vpop.f32.mrb[0].mxu0
      %600 = vmatprep.mubr.f32.mxu0 0.0
      %601 = vmatmul.mubr.f32.gmra.mrb[0].mxu0 %v415
      %v602 = vpop.f32.mrb[0].mxu0
      %v603 = vadd.f32 %v372, %v602
      %v604 = vpop.f32.mrb[0].mxu0
      %605 = vmatprep.mubr.f32.mxu0 0.0
      %606 = vmatmul.mubr.f32.gmra.mrb[0].mxu0 %v418
      %v607 = vpop.f32.mrb[0].mxu0
      %v608 = vadd.f32 %v372, %v607
      %v609 = vpop.f32.mrb[0].mxu0
      %610 = vmatprep.mubr.f32.mxu0 0.0
      %611 = vmatmul.mubr.f32.gmra.mrb[0].mxu0 %v421
      %v612 = vpop.f32.mrb[0].mxu0
      %v613 = vadd.f32 %v372, %v612
      %v614 = vpop.f32.mrb[0].mxu0
      %615 = vmatprep.mubr.f32.mxu0 0.0
      %616 = vmatmul.mubr.f32.gmra.mrb[0].mxu0 %v424
      %v617 = vpop.f32.mrb[0].mxu0
      %v618 = vadd.f32 %v372, %v617
      %v619 = vpop.f32.mrb[0].mxu0
      %620 = vmatprep.mubr.f32.mxu0 0.0
      %621 = vmatmul.mubr.f32.gmra.mrb[0].mxu0 %v427
      %v622 = vpop.f32.mrb[0].mxu0
      %v623 = vadd.f32 %v372, %v622
      %v624 = vpop.f32.mrb[0].mxu0
      %625 = vmatprep.mubr.f32.mxu0 0.0
      %626 = vmatmul.mubr.f32.gmra.mrb[0].mxu0 %v430
      %v627 = vpop.f32.mrb[0].mxu0
      %v628 = vadd.f32 %v372, %v627
      %v629 = vpop.f32.mrb[0].mxu0
      %630 = vmatprep.mubr.f32.mxu0 0.0
      %631 = vmatmul.mubr.f32.gmra.mrb[0].mxu0 %v433
      %v632 = vpop.f32.mrb[0].mxu0
      %v633 = vadd.f32 %v372, %v632
      %v634 = vpop.f32.mrb[0].mxu0
      %635 = vmatprep.mubr.f32.mxu0 0.0
      %636 = vmatmul.mubr.f32.gmra.mrb[0].mxu0 %v436
      %v637 = vpop.f32.mrb[0].mxu0
      %v638 = vadd.f32 %v372, %v637
      %v639 = vpop.f32.mrb[0].mxu0
      %640 = vmatprep.mubr.f32.mxu0 0.0
      %641 = vmatmul.mubr.f32.gmra.mrb[0].mxu0 %v439
      %v642 = vpop.f32.mrb[0].mxu0
      %v643 = vadd.f32 %v372, %v642
      %v644 = vpop.f32.mrb[0].mxu0
      %645 = vmatprep.mubr.f32.mxu0 0.0
      %646 = vmatmul.mubr.f32.gmra.mrb[0].mxu0 %v442
      %v647 = vpop.f32.mrb[0].mxu0
      %v648 = vadd.f32 %v372, %v647
      %v649 = vpop.f32.mrb[0].mxu0
      %650 = vmatprep.mubr.f32.mxu0 0.0
      %651 = vmatmul.mubr.f32.gmra.mrb[0].mxu0 %v445
      %v652 = vpop.f32.mrb[0].mxu0
      %v653 = vadd.f32 %v372, %v652
      %v654 = vpop.f32.mrb[0].mxu0
      %655 = vmatprep.mubr.f32.mxu0 0.0
      %656 = vmatmul.mubr.f32.gmra.mrb[0].mxu0 %v448
      %v657 = vpop.f32.mrb[0].mxu0
      %v658 = vadd.f32 %v372, %v657
      %v659 = vpop.f32.mrb[0].mxu0
      %660 = vmatprep.mubr.f32.mxu0 0.0
      %661 = vmatmul.mubr.f32.gmra.mrb[0].mxu0 %v451
      %v662 = vpop.f32.mrb[0].mxu0
      %v663 = vadd.f32 %v372, %v662
      %v664 = vpop.f32.mrb[0].mxu0
      %665 = vmatprep.mubr.f32.mxu0 0.0
      %666 = vmatmul.mubr.f32.gmra.mrb[0].mxu0 %v454
      %v667 = vpop.f32.mrb[0].mxu0
      %v668 = vadd.f32 %v372, %v667
      %v669 = vpop.f32.mrb[0].mxu0
      %670 = vmatprep.mubr.f32.mxu0 0.0
      %671 = vmatmul.mubr.f32.gmra.mrb[0].mxu0 %v457
      %v672 = vpop.f32.mrb[0].mxu0
      %v673 = vadd.f32 %v372, %v672
      %v674 = vpop.f32.mrb[0].mxu0
      %675 = vmatprep.mubr.f32.mxu0 0.0
      %676 = vmatmul.mubr.f32.gmra.mrb[0].mxu0 %v460
      %v677 = vpop.f32.mrb[0].mxu0
      %v678 = vadd.f32 %v372, %v677
      %v679 = vpop.f32.mrb[0].mxu0
      %680 = vmatprep.mubr.f32.mxu0 0.0
      %681 = vmatmul.mubr.f32.gmra.mrb[0].mxu0 %v463
      %v682 = vpop.f32.mrb[0].mxu0
      %v683 = vadd.f32 %v372, %v682
      %v684 = vpop.f32.mrb[0].mxu0
      %685 = vmatprep.mubr.f32.mxu0 0.0
      %686 = vmatmul.mubr.f32.gmra.mrb[0].mxu0 %v466
      %v687 = vpop.f32.mrb[0].mxu0
      %v688 = vadd.f32 %v372, %v687
      %v689 = vpop.f32.mrb[0].mxu0
      %690 = vmatprep.mubr.f32.mxu0 0.0
      %691 = vmatmul.mubr.f32.gmra.mrb[0].mxu0 %v469
      %v692 = vpop.f32.mrb[0].mxu0
      %v693 = vadd.f32 %v372, %v692
      %v694 = vpop.f32.mrb[0].mxu0
      %695 = vdwg.mxu0
      %v696 = vmax.f32 %v538, 0.0
      %v697 = vmax.f32 %v543, 0.0
      %v698 = vmax.f32 %v548, 0.0
      %v699 = vmax.f32 %v553, 0.0
      %v700 = vmax.f32 %v558, 0.0
      %v701 = vmax.f32 %v563, 0.0
      %v702 = vmax.f32 %v568, 0.0
      %v703 = vmax.f32 %v573, 0.0
      %v704 = vmax.f32 %v578, 0.0
      %v705 = vmax.f32 %v583, 0.0
      %v706 = vmax.f32 %v588, 0.0
      %v707 = vmax.f32 %v593, 0.0
      %v708 = vmax.f32 %v598, 0.0
      %v709 = vmax.f32 %v603, 0.0
      %v710 = vmax.f32 %v608, 0.0
      %v711 = vmax.f32 %v613, 0.0
      %v712 = vmax.f32 %v618, 0.0
      %v713 = vmax.f32 %v623, 0.0
      %v714 = vmax.f32 %v628, 0.0
      %v715 = vmax.f32 %v633, 0.0
      %v716 = vmax.f32 %v638, 0.0
      %v717 = vmax.f32 %v643, 0.0
      %v718 = vmax.f32 %v648, 0.0
      %v719 = vmax.f32 %v653, 0.0
      %v720 = vmax.f32 %v658, 0.0
      %v721 = vmax.f32 %v663, 0.0
      %v722 = vmax.f32 %v668, 0.0
      %v723 = vmax.f32 %v673, 0.0
      %v724 = vmax.f32 %v678, 0.0
      %v725 = vmax.f32 %v683, 0.0
      %v726 = vmax.f32 %v688, 0.0
      %v727 = vmax.f32 %v693, 0.0
      %v728 = vld [vmem:[%s3] sm:$0xff]
      %v729 = vld [vmem:[%s3 + $0x8] sm:$0x1]
      %v730 = vld [vmem:[%s4] sm:$0x1]
      %vm731 = vcmask 64512
      %732 = vst.msk [vmem:[#allocation2] sm:$0xff] %vm731, 0.0
      %733 = vst.msk [vmem:[#allocation2 + $0x8] sm:$0xff] %vm731, 0.0
      %vm734 = vcmask 58368
      %735 = vst.msk [vmem:[#allocation2 + $0x10] sm:$0x3] %vm734, 0.0
      %s736 = scalar_lea.vmem [#allocation2], 408
      %737 = vst.msk [vmem:[%s736] sm:$0xff] %vm731, 0.0
      %738 = vst.msk [vmem:[%s736 + $0x8] sm:$0xff] %vm731, 0.0
      %739 = vst.msk [vmem:[%s736 + $0x10] sm:$0x3] %vm734, 0.0
      %s740 = scalar_lea.vmem [#allocation2], 24
      %vm741 = vcmask 57344
      %742 = vst.msk [vmem:[%s740] sm:$0x1] %vm741, 0.0
      %743 = vst.msk [vmem:[%s740 + $0x18] sm:$0x1] %vm741, 0.0
      %744 = vst.msk [vmem:[%s740 + $0x30] sm:$0x1] %vm741, 0.0
      %745 = vst.msk [vmem:[%s740 + $0x48] sm:$0x1] %vm741, 0.0
      %746 = vst.msk [vmem:[%s740 + $0x60] sm:$0x1] %vm741, 0.0
      %747 = vst.msk [vmem:[%s740 + $0x78] sm:$0x1] %vm741, 0.0
      %748 = vst.msk [vmem:[%s740 + $0x90] sm:$0x1] %vm741, 0.0
      %749 = vst.msk [vmem:[%s740 + $0xa8] sm:$0x1] %vm741, 0.0
      %750 = vst.msk [vmem:[%s740 + $0xc0] sm:$0x1] %vm741, 0.0
      %751 = vst.msk [vmem:[%s740 + $0xd8] sm:$0x1] %vm741, 0.0
      %752 = vst.msk [vmem:[%s740 + $0xf0] sm:$0x1] %vm741, 0.0
      %753 = vst.msk [vmem:[%s740 + $0x108] sm:$0x1] %vm741, 0.0
      %754 = vst.msk [vmem:[%s740 + $0x120] sm:$0x1] %vm741, 0.0
      %755 = vst.msk [vmem:[%s740 + $0x138] sm:$0x1] %vm741, 0.0
      %756 = vst.msk [vmem:[%s740 + $0x150] sm:$0x1] %vm741, 0.0
      %757 = vst.msk [vmem:[%s740 + $0x168] sm:$0x1] %vm741, 0.0
      %758 = vst.msk [vmem:[%s740 + $0x11] sm:$0x1] %vm741, 0.0
      %759 = vst.msk [vmem:[%s740 + $0x29] sm:$0x1] %vm741, 0.0
      %760 = vst.msk [vmem:[%s740 + $0x41] sm:$0x1] %vm741, 0.0
      %761 = vst.msk [vmem:[%s740 + $0x59] sm:$0x1] %vm741, 0.0
      %762 = vst.msk [vmem:[%s740 + $0x71] sm:$0x1] %vm741, 0.0
      %763 = vst.msk [vmem:[%s740 + $0x89] sm:$0x1] %vm741, 0.0
      %764 = vst.msk [vmem:[%s740 + $0xa1] sm:$0x1] %vm741, 0.0
      %765 = vst.msk [vmem:[%s740 + $0xb9] sm:$0x1] %vm741, 0.0
      %766 = vst.msk [vmem:[%s740 + $0xd1] sm:$0x1] %vm741, 0.0
      %767 = vst.msk [vmem:[%s740 + $0xe9] sm:$0x1] %vm741, 0.0
      %768 = vst.msk [vmem:[%s740 + $0x101] sm:$0x1] %vm741, 0.0
      %769 = vst.msk [vmem:[%s740 + $0x119] sm:$0x1] %vm741, 0.0
      %770 = vst.msk [vmem:[%s740 + $0x131] sm:$0x1] %vm741, 0.0
      %771 = vst.msk [vmem:[%s740 + $0x149] sm:$0x1] %vm741, 0.0
      %772 = vst.msk [vmem:[%s740 + $0x161] sm:$0x1] %vm741, 0.0
      %773 = vst.msk [vmem:[%s740 + $0x179] sm:$0x1] %vm741, 0.0
      %774 = vst.msk [vmem:[%s740 + $0x1] sm:$0xff] %vm731, %v696
      %775 = vst.msk [vmem:[%s740 + $0x9] sm:$0xff] %vm731, %v697
      %776 = vst.msk [vmem:[%s740 + $0x19] sm:$0xff] %vm731, %v698
      %777 = vst.msk [vmem:[%s740 + $0x21] sm:$0xff] %vm731, %v699
      %778 = vst.msk [vmem:[%s740 + $0x31] sm:$0xff] %vm731, %v700
      %779 = vst.msk [vmem:[%s740 + $0x39] sm:$0xff] %vm731, %v701
      %780 = vst.msk [vmem:[%s740 + $0x49] sm:$0xff] %vm731, %v702
      %781 = vst.msk [vmem:[%s740 + $0x51] sm:$0xff] %vm731, %v703
      %782 = vst.msk [vmem:[%s740 + $0x61] sm:$0xff] %vm731, %v704
      %783 = vst.msk [vmem:[%s740 + $0x69] sm:$0xff] %vm731, %v705
      %784 = vst.msk [vmem:[%s740 + $0x79] sm:$0xff] %vm731, %v706
      %785 = vst.msk [vmem:[%s740 + $0x81] sm:$0xff] %vm731, %v707
      %786 = vst.msk [vmem:[%s740 + $0x91] sm:$0xff] %vm731, %v708
      %787 = vst.msk [vmem:[%s740 + $0x99] sm:$0xff] %vm731, %v709
      %788 = vst.msk [vmem:[%s740 + $0xa9] sm:$0xff] %vm731, %v710
      %789 = vst.msk [vmem:[%s740 + $0xb1] sm:$0xff] %vm731, %v711
      %790 = vst.msk [vmem:[%s740 + $0xc1] sm:$0xff] %vm731, %v712
      %791 = vst.msk [vmem:[%s740 + $0xc9] sm:$0xff] %vm731, %v713
      %792 = vst.msk [vmem:[%s740 + $0xd9] sm:$0xff] %vm731, %v714
      %793 = vst.msk [vmem:[%s740 + $0xe1] sm:$0xff] %vm731, %v715
      %794 = vst.msk [vmem:[%s740 + $0xf1] sm:$0xff] %vm731, %v716
      %795 = vst.msk [vmem:[%s740 + $0xf9] sm:$0xff] %vm731, %v717
      %796 = vst.msk [vmem:[%s740 + $0x109] sm:$0xff] %vm731, %v718
      %797 = vst.msk [vmem:[%s740 + $0x111] sm:$0xff] %vm731, %v719
      %798 = vst.msk [vmem:[%s740 + $0x121] sm:$0xff] %vm731, %v720
      %799 = vst.msk [vmem:[%s740 + $0x129] sm:$0xff] %vm731, %v721
      %800 = vst.msk [vmem:[%s740 + $0x139] sm:$0xff] %vm731, %v722
      %801 = vst.msk [vmem:[%s740 + $0x141] sm:$0xff] %vm731, %v723
      %802 = vst.msk [vmem:[%s740 + $0x151] sm:$0xff] %vm731, %v724
      %803 = vst.msk [vmem:[%s740 + $0x159] sm:$0xff] %vm731, %v725
      %804 = vst.msk [vmem:[%s740 + $0x169] sm:$0xff] %vm731, %v726
      %805 = vst.msk [vmem:[%s740 + $0x171] sm:$0xff] %vm731, %v727
      %v806 = vld [vmem:[#allocation2] sm:$0xff]
      %v807 = vld [vmem:[#allocation2 + $0x8] sm:$0xff]
      %v808 = vld [vmem:[#allocation2 + $0x18] sm:$0xff]
      %v809 = vld [vmem:[#allocation2 + $0x20] sm:$0xff]
      %v810 = vld [vmem:[#allocation2 + $0x30] sm:$0xff]
      %v811 = vld [vmem:[#allocation2 + $0x38] sm:$0xff]
      %v812 = vld [vmem:[#allocation2 + $0x48] sm:$0xff]
      %v813 = vld [vmem:[#allocation2 + $0x50] sm:$0xff]
      %v814 = vld [vmem:[#allocation2 + $0x60] sm:$0xff]
      %v815 = vld [vmem:[#allocation2 + $0x68] sm:$0xff]
      %v816 = vld [vmem:[#allocation2 + $0x78] sm:$0xff]
      %v817 = vld [vmem:[#allocation2 + $0x80] sm:$0xff]
      %v818 = vld [vmem:[#allocation2 + $0x90] sm:$0xff]
      %v819 = vld [vmem:[#allocation2 + $0x98] sm:$0xff]
      %v820 = vld [vmem:[#allocation2 + $0xa8] sm:$0xff]
      %v821 = vld [vmem:[#allocation2 + $0xb0] sm:$0xff]
      %v822 = vld [vmem:[#allocation2 + $0xc0] sm:$0xff]
      %v823 = vld [vmem:[#allocation2 + $0xc8] sm:$0xff]
      %v824 = vld [vmem:[#allocation2 + $0xd8] sm:$0xff]
      %v825 = vld [vmem:[#allocation2 + $0xe0] sm:$0xff]
      %v826 = vld [vmem:[#allocation2 + $0xf0] sm:$0xff]
      %v827 = vld [vmem:[#allocation2 + $0xf8] sm:$0xff]
      %v828 = vld [vmem:[#allocation2 + $0x108] sm:$0xff]
      %v829 = vld [vmem:[#allocation2 + $0x110] sm:$0xff]
      %v830 = vld [vmem:[#allocation2 + $0x120] sm:$0xff]
      %v831 = vld [vmem:[#allocation2 + $0x128] sm:$0xff]
      %v832 = vld [vmem:[#allocation2 + $0x138] sm:$0xff]
      %v833 = vld [vmem:[#allocation2 + $0x140] sm:$0xff]
      %v834 = vld [vmem:[#allocation2 + $0x150] sm:$0xff]
      %v835 = vld [vmem:[#allocation2 + $0x158] sm:$0xff]
      %v836 = vld [vmem:[#allocation2 + $0x168] sm:$0xff]
      %v837 = vld [vmem:[#allocation2 + $0x170] sm:$0xff]
      %v838 = vlaneseq
      %v839 = vshrl.u32 %v838, 7
      %v840 = vsub.s32 0, %v839
      %v841 = vrot.slane %v728, %v840
      %v842 = vmul.f32 %v806, %v841
      %v843 = vmul.f32 %v807, %v841
      %v844 = vmul.f32 %v808, %v841
      %v845 = vmul.f32 %v809, %v841
      %v846 = vmul.f32 %v810, %v841
      %v847 = vmul.f32 %v811, %v841
      %v848 = vmul.f32 %v812, %v841
      %v849 = vmul.f32 %v813, %v841
      %v850 = vmul.f32 %v814, %v841
      %v851 = vmul.f32 %v815, %v841
      %v852 = vmul.f32 %v816, %v841
      %v853 = vmul.f32 %v817, %v841
      %v854 = vmul.f32 %v818, %v841
      %v855 = vmul.f32 %v819, %v841
      %v856 = vmul.f32 %v820, %v841
      %v857 = vmul.f32 %v821, %v841
      %v858 = vmul.f32 %v822, %v841
      %v859 = vmul.f32 %v823, %v841
      %v860 = vmul.f32 %v824, %v841
      %v861 = vmul.f32 %v825, %v841
      %v862 = vmul.f32 %v826, %v841
      %v863 = vmul.f32 %v827, %v841
      %v864 = vmul.f32 %v828, %v841
      %v865 = vmul.f32 %v829, %v841
      %v866 = vmul.f32 %v830, %v841
      %v867 = vmul.f32 %v831, %v841
      %v868 = vmul.f32 %v832, %v841
      %v869 = vmul.f32 %v833, %v841
      %v870 = vmul.f32 %v834, %v841
      %v871 = vmul.f32 %v835, %v841
      %v872 = vmul.f32 %v836, %v841
      %v873 = vmul.f32 %v837, %v841
      %v874 = vadd.f32 %v842, 0.0
      %v875 = vadd.f32 %v843, 0.0
      %v876 = vadd.f32 %v844, 0.0
      %v877 = vadd.f32 %v845, 0.0
      %v878 = vadd.f32 %v846, 0.0
      %v879 = vadd.f32 %v847, 0.0
      %v880 = vadd.f32 %v848, 0.0
      %v881 = vadd.f32 %v849, 0.0
      %v882 = vadd.f32 %v850, 0.0
      %v883 = vadd.f32 %v851, 0.0
      %v884 = vadd.f32 %v852, 0.0
      %v885 = vadd.f32 %v853, 0.0
      %v886 = vadd.f32 %v854, 0.0
      %v887 = vadd.f32 %v855, 0.0
      %v888 = vadd.f32 %v856, 0.0
      %v889 = vadd.f32 %v857, 0.0
      %v890 = vadd.f32 %v858, 0.0
      %v891 = vadd.f32 %v859, 0.0
      %v892 = vadd.f32 %v860, 0.0
      %v893 = vadd.f32 %v861, 0.0
      %v894 = vadd.f32 %v862, 0.0
      %v895 = vadd.f32 %v863, 0.0
      %v896 = vadd.f32 %v864, 0.0
      %v897 = vadd.f32 %v865, 0.0
      %v898 = vadd.f32 %v866, 0.0
      %v899 = vadd.f32 %v867, 0.0
      %v900 = vadd.f32 %v868, 0.0
      %v901 = vadd.f32 %v869, 0.0
      %v902 = vadd.f32 %v870, 0.0
      %v903 = vadd.f32 %v871, 0.0
      %v904 = vadd.f32 %v872, 0.0
      %v905 = vadd.f32 %v873, 0.0
      %v906 = vld [vmem:[#allocation2 + $0x1] sm:$0xff]
      %v907 = vld [vmem:[#allocation2 + $0x9] sm:$0xff]
      %v908 = vld [vmem:[#allocation2 + $0x19] sm:$0xff]
      %v909 = vld [vmem:[#allocation2 + $0x21] sm:$0xff]
      %v910 = vld [vmem:[#allocation2 + $0x31] sm:$0xff]
      %v911 = vld [vmem:[#allocation2 + $0x39] sm:$0xff]
      %v912 = vld [vmem:[#allocation2 + $0x49] sm:$0xff]
      %v913 = vld [vmem:[#allocation2 + $0x51] sm:$0xff]
      %v914 = vld [vmem:[#allocation2 + $0x61] sm:$0xff]
      %v915 = vld [vmem:[#allocation2 + $0x69] sm:$0xff]
      %v916 = vld [vmem:[#allocation2 + $0x79] sm:$0xff]
      %v917 = vld [vmem:[#allocation2 + $0x81] sm:$0xff]
      %v918 = vld [vmem:[#allocation2 + $0x91] sm:$0xff]
      %v919 = vld [vmem:[#allocation2 + $0x99] sm:$0xff]
      %v920 = vld [vmem:[#allocation2 + $0xa9] sm:$0xff]
      %v921 = vld [vmem:[#allocation2 + $0xb1] sm:$0xff]
      %v922 = vld [vmem:[#allocation2 + $0xc1] sm:$0xff]
      %v923 = vld [vmem:[#allocation2 + $0xc9] sm:$0xff]
      %v924 = vld [vmem:[#allocation2 + $0xd9] sm:$0xff]
      %v925 = vld [vmem:[#allocation2 + $0xe1] sm:$0xff]
      %v926 = vld [vmem:[#allocation2 + $0xf1] sm:$0xff]
      %v927 = vld [vmem:[#allocation2 + $0xf9] sm:$0xff]
      %v928 = vld [vmem:[#allocation2 + $0x109] sm:$0xff]
      %v929 = vld [vmem:[#allocation2 + $0x111] sm:$0xff]
      %v930 = vld [vmem:[#allocation2 + $0x121] sm:$0xff]
      %v931 = vld [vmem:[#allocation2 + $0x129] sm:$0xff]
      %v932 = vld [vmem:[#allocation2 + $0x139] sm:$0xff]
      %v933 = vld [vmem:[#allocation2 + $0x141] sm:$0xff]
      %v934 = vld [vmem:[#allocation2 + $0x151] sm:$0xff]
      %v935 = vld [vmem:[#allocation2 + $0x159] sm:$0xff]
      %v936 = vld [vmem:[#allocation2 + $0x169] sm:$0xff]
      %v937 = vld [vmem:[#allocation2 + $0x171] sm:$0xff]
      %v938 = vlaneseq
      %v939 = vshrl.u32 %v938, 7
      %v940 = vsub.s32 1, %v939
      %v941 = vrot.slane %v728, %v940
      %v942 = vmul.f32 %v906, %v941
      %v943 = vmul.f32 %v907, %v941
      %v944 = vmul.f32 %v908, %v941
      %v945 = vmul.f32 %v909, %v941
      %v946 = vmul.f32 %v910, %v941
      %v947 = vmul.f32 %v911, %v941
      %v948 = vmul.f32 %v912, %v941
      %v949 = vmul.f32 %v913, %v941
      %v950 = vmul.f32 %v914, %v941
      %v951 = vmul.f32 %v915, %v941
      %v952 = vmul.f32 %v916, %v941
      %v953 = vmul.f32 %v917, %v941
      %v954 = vmul.f32 %v918, %v941
      %v955 = vmul.f32 %v919, %v941
      %v956 = vmul.f32 %v920, %v941
      %v957 = vmul.f32 %v921, %v941
      %v958 = vmul.f32 %v922, %v941
      %v959 = vmul.f32 %v923, %v941
      %v960 = vmul.f32 %v924, %v941
      %v961 = vmul.f32 %v925, %v941
      %v962 = vmul.f32 %v926, %v941
      %v963 = vmul.f32 %v927, %v941
      %v964 = vmul.f32 %v928, %v941
      %v965 = vmul.f32 %v929, %v941
      %v966 = vmul.f32 %v930, %v941
      %v967 = vmul.f32 %v931, %v941
      %v968 = vmul.f32 %v932, %v941
      %v969 = vmul.f32 %v933, %v941
      %v970 = vmul.f32 %v934, %v941
      %v971 = vmul.f32 %v935, %v941
      %v972 = vmul.f32 %v936, %v941
      %v973 = vmul.f32 %v937, %v941
      %v974 = vadd.f32 %v874, %v942
      %v975 = vadd.f32 %v875, %v943
      %v976 = vadd.f32 %v876, %v944
      %v977 = vadd.f32 %v877, %v945
      %v978 = vadd.f32 %v878, %v946
      %v979 = vadd.f32 %v879, %v947
      %v980 = vadd.f32 %v880, %v948
      %v981 = vadd.f32 %v881, %v949
      %v982 = vadd.f32 %v882, %v950
      %v983 = vadd.f32 %v883, %v951
      %v984 = vadd.f32 %v884, %v952
      %v985 = vadd.f32 %v885, %v953
      %v986 = vadd.f32 %v886, %v954
      %v987 = vadd.f32 %v887, %v955
      %v988 = vadd.f32 %v888, %v956
      %v989 = vadd.f32 %v889, %v957
      %v990 = vadd.f32 %v890, %v958
      %v991 = vadd.f32 %v891, %v959
      %v992 = vadd.f32 %v892, %v960
      %v993 = vadd.f32 %v893, %v961
      %v994 = vadd.f32 %v894, %v962
      %v995 = vadd.f32 %v895, %v963
      %v996 = vadd.f32 %v896, %v964
      %v997 = vadd.f32 %v897, %v965
      %v998 = vadd.f32 %v898, %v966
      %v999 = vadd.f32 %v899, %v967
      %v1000 = vadd.f32 %v900, %v968
      %v1001 = vadd.f32 %v901, %v969
      %v1002 = vadd.f32 %v902, %v970
      %v1003 = vadd.f32 %v903, %v971
      %v1004 = vadd.f32 %v904, %v972
      %v1005 = vadd.f32 %v905, %v973
      %v1006 = vld [vmem:[#allocation2 + $0x2] sm:$0xff]
      %v1007 = vld [vmem:[#allocation2 + $0xa] sm:$0xff]
      %v1008 = vld [vmem:[#allocation2 + $0x1a] sm:$0xff]
      %v1009 = vld [vmem:[#allocation2 + $0x22] sm:$0xff]
      %v1010 = vld [vmem:[#allocation2 + $0x32] sm:$0xff]
      %v1011 = vld [vmem:[#allocation2 + $0x3a] sm:$0xff]
      %v1012 = vld [vmem:[#allocation2 + $0x4a] sm:$0xff]
      %v1013 = vld [vmem:[#allocation2 + $0x52] sm:$0xff]
      %v1014 = vld [vmem:[#allocation2 + $0x62] sm:$0xff]
      %v1015 = vld [vmem:[#allocation2 + $0x6a] sm:$0xff]
      %v1016 = vld [vmem:[#allocation2 + $0x7a] sm:$0xff]
      %v1017 = vld [vmem:[#allocation2 + $0x82] sm:$0xff]
      %v1018 = vld [vmem:[#allocation2 + $0x92] sm:$0xff]
      %v1019 = vld [vmem:[#allocation2 + $0x9a] sm:$0xff]
      %v1020 = vld [vmem:[#allocation2 + $0xaa] sm:$0xff]
      %v1021 = vld [vmem:[#allocation2 + $0xb2] sm:$0xff]
      %v1022 = vld [vmem:[#allocation2 + $0xc2] sm:$0xff]
      %v1023 = vld [vmem:[#allocation2 + $0xca] sm:$0xff]
      %v1024 = vld [vmem:[#allocation2 + $0xda] sm:$0xff]
      %v1025 = vld [vmem:[#allocation2 + $0xe2] sm:$0xff]
      %v1026 = vld [vmem:[#allocation2 + $0xf2] sm:$0xff]
      %v1027 = vld [vmem:[#allocation2 + $0xfa] sm:$0xff]
      %v1028 = vld [vmem:[#allocation2 + $0x10a] sm:$0xff]
      %v1029 = vld [vmem:[#allocation2 + $0x112] sm:$0xff]
      %v1030 = vld [vmem:[#allocation2 + $0x122] sm:$0xff]
      %v1031 = vld [vmem:[#allocation2 + $0x12a] sm:$0xff]
      %v1032 = vld [vmem:[#allocation2 + $0x13a] sm:$0xff]
      %v1033 = vld [vmem:[#allocation2 + $0x142] sm:$0xff]
      %v1034 = vld [vmem:[#allocation2 + $0x152] sm:$0xff]
      %v1035 = vld [vmem:[#allocation2 + $0x15a] sm:$0xff]
      %v1036 = vld [vmem:[#allocation2 + $0x16a] sm:$0xff]
      %v1037 = vld [vmem:[#allocation2 + $0x172] sm:$0xff]
      %v1038 = vlaneseq
      %v1039 = vshrl.u32 %v1038, 7
      %v1040 = vsub.s32 2, %v1039
      %v1041 = vrot.slane %v728, %v1040
      %v1042 = vmul.f32 %v1006, %v1041
      %v1043 = vmul.f32 %v1007, %v1041
      %v1044 = vmul.f32 %v1008, %v1041
      %v1045 = vmul.f32 %v1009, %v1041
      %v1046 = vmul.f32 %v1010, %v1041
      %v1047 = vmul.f32 %v1011, %v1041
      %v1048 = vmul.f32 %v1012, %v1041
      %v1049 = vmul.f32 %v1013, %v1041
      %v1050 = vmul.f32 %v1014, %v1041
      %v1051 = vmul.f32 %v1015, %v1041
      %v1052 = vmul.f32 %v1016, %v1041
      %v1053 = vmul.f32 %v1017, %v1041
      %v1054 = vmul.f32 %v1018, %v1041
      %v1055 = vmul.f32 %v1019, %v1041
      %v1056 = vmul.f32 %v1020, %v1041
      %v1057 = vmul.f32 %v1021, %v1041
      %v1058 = vmul.f32 %v1022, %v1041
      %v1059 = vmul.f32 %v1023, %v1041
      %v1060 = vmul.f32 %v1024, %v1041
      %v1061 = vmul.f32 %v1025, %v1041
      %v1062 = vmul.f32 %v1026, %v1041
      %v1063 = vmul.f32 %v1027, %v1041
      %v1064 = vmul.f32 %v1028, %v1041
      %v1065 = vmul.f32 %v1029, %v1041
      %v1066 = vmul.f32 %v1030, %v1041
      %v1067 = vmul.f32 %v1031, %v1041
      %v1068 = vmul.f32 %v1032, %v1041
      %v1069 = vmul.f32 %v1033, %v1041
      %v1070 = vmul.f32 %v1034, %v1041
      %v1071 = vmul.f32 %v1035, %v1041
      %v1072 = vmul.f32 %v1036, %v1041
      %v1073 = vmul.f32 %v1037, %v1041
      %v1074 = vadd.f32 %v974, %v1042
      %v1075 = vadd.f32 %v975, %v1043
      %v1076 = vadd.f32 %v976, %v1044
      %v1077 = vadd.f32 %v977, %v1045
      %v1078 = vadd.f32 %v978, %v1046
      %v1079 = vadd.f32 %v979, %v1047
      %v1080 = vadd.f32 %v980, %v1048
      %v1081 = vadd.f32 %v981, %v1049
      %v1082 = vadd.f32 %v982, %v1050
      %v1083 = vadd.f32 %v983, %v1051
      %v1084 = vadd.f32 %v984, %v1052
      %v1085 = vadd.f32 %v985, %v1053
      %v1086 = vadd.f32 %v986, %v1054
      %v1087 = vadd.f32 %v987, %v1055
      %v1088 = vadd.f32 %v988, %v1056
      %v1089 = vadd.f32 %v989, %v1057
      %v1090 = vadd.f32 %v990, %v1058
      %v1091 = vadd.f32 %v991, %v1059
      %v1092 = vadd.f32 %v992, %v1060
      %v1093 = vadd.f32 %v993, %v1061
      %v1094 = vadd.f32 %v994, %v1062
      %v1095 = vadd.f32 %v995, %v1063
      %v1096 = vadd.f32 %v996, %v1064
      %v1097 = vadd.f32 %v997, %v1065
      %v1098 = vadd.f32 %v998, %v1066
      %v1099 = vadd.f32 %v999, %v1067
      %v1100 = vadd.f32 %v1000, %v1068
      %v1101 = vadd.f32 %v1001, %v1069
      %v1102 = vadd.f32 %v1002, %v1070
      %v1103 = vadd.f32 %v1003, %v1071
      %v1104 = vadd.f32 %v1004, %v1072
      %v1105 = vadd.f32 %v1005, %v1073
      %v1106 = vld [vmem:[%s740] sm:$0xff]
      %v1107 = vld [vmem:[%s740 + $0x8] sm:$0xff]
      %v1108 = vld [vmem:[%s740 + $0x18] sm:$0xff]
      %v1109 = vld [vmem:[%s740 + $0x20] sm:$0xff]
      %v1110 = vld [vmem:[%s740 + $0x30] sm:$0xff]
      %v1111 = vld [vmem:[%s740 + $0x38] sm:$0xff]
      %v1112 = vld [vmem:[%s740 + $0x48] sm:$0xff]
      %v1113 = vld [vmem:[%s740 + $0x50] sm:$0xff]
      %v1114 = vld [vmem:[%s740 + $0x60] sm:$0xff]
      %v1115 = vld [vmem:[%s740 + $0x68] sm:$0xff]
      %v1116 = vld [vmem:[%s740 + $0x78] sm:$0xff]
      %v1117 = vld [vmem:[%s740 + $0x80] sm:$0xff]
      %v1118 = vld [vmem:[%s740 + $0x90] sm:$0xff]
      %v1119 = vld [vmem:[%s740 + $0x98] sm:$0xff]
      %v1120 = vld [vmem:[%s740 + $0xa8] sm:$0xff]
      %v1121 = vld [vmem:[%s740 + $0xb0] sm:$0xff]
      %v1122 = vld [vmem:[%s740 + $0xc0] sm:$0xff]
      %v1123 = vld [vmem:[%s740 + $0xc8] sm:$0xff]
      %v1124 = vld [vmem:[%s740 + $0xd8] sm:$0xff]
      %v1125 = vld [vmem:[%s740 + $0xe0] sm:$0xff]
      %v1126 = vld [vmem:[%s740 + $0xf0] sm:$0xff]
      %v1127 = vld [vmem:[%s740 + $0xf8] sm:$0xff]
      %v1128 = vld [vmem:[%s740 + $0x108] sm:$0xff]
      %v1129 = vld [vmem:[%s740 + $0x110] sm:$0xff]
      %v1130 = vld [vmem:[%s740 + $0x120] sm:$0xff]
      %v1131 = vld [vmem:[%s740 + $0x128] sm:$0xff]
      %v1132 = vld [vmem:[%s740 + $0x138] sm:$0xff]
      %v1133 = vld [vmem:[%s740 + $0x140] sm:$0xff]
      %v1134 = vld [vmem:[%s740 + $0x150] sm:$0xff]
      %v1135 = vld [vmem:[%s740 + $0x158] sm:$0xff]
      %v1136 = vld [vmem:[%s740 + $0x168] sm:$0xff]
      %v1137 = vld [vmem:[%s740 + $0x170] sm:$0xff]
      %v1138 = vlaneseq
      %v1139 = vshrl.u32 %v1138, 7
      %v1140 = vsub.s32 3, %v1139
      %v1141 = vrot.slane %v728, %v1140
      %v1142 = vmul.f32 %v1106, %v1141
      %v1143 = vmul.f32 %v1107, %v1141
      %v1144 = vmul.f32 %v1108, %v1141
      %v1145 = vmul.f32 %v1109, %v1141
      %v1146 = vmul.f32 %v1110, %v1141
      %v1147 = vmul.f32 %v1111, %v1141
      %v1148 = vmul.f32 %v1112, %v1141
      %v1149 = vmul.f32 %v1113, %v1141
      %v1150 = vmul.f32 %v1114, %v1141
      %v1151 = vmul.f32 %v1115, %v1141
      %v1152 = vmul.f32 %v1116, %v1141
      %v1153 = vmul.f32 %v1117, %v1141
      %v1154 = vmul.f32 %v1118, %v1141
      %v1155 = vmul.f32 %v1119, %v1141
      %v1156 = vmul.f32 %v1120, %v1141
      %v1157 = vmul.f32 %v1121, %v1141
      %v1158 = vmul.f32 %v1122, %v1141
      %v1159 = vmul.f32 %v1123, %v1141
      %v1160 = vmul.f32 %v1124, %v1141
      %v1161 = vmul.f32 %v1125, %v1141
      %v1162 = vmul.f32 %v1126, %v1141
      %v1163 = vmul.f32 %v1127, %v1141
      %v1164 = vmul.f32 %v1128, %v1141
      %v1165 = vmul.f32 %v1129, %v1141
      %v1166 = vmul.f32 %v1130, %v1141
      %v1167 = vmul.f32 %v1131, %v1141
      %v1168 = vmul.f32 %v1132, %v1141
      %v1169 = vmul.f32 %v1133, %v1141
      %v1170 = vmul.f32 %v1134, %v1141
      %v1171 = vmul.f32 %v1135, %v1141
      %v1172 = vmul.f32 %v1136, %v1141
      %v1173 = vmul.f32 %v1137, %v1141
      %v1174 = vadd.f32 %v1074, %v1142
      %v1175 = vadd.f32 %v1075, %v1143
      %v1176 = vadd.f32 %v1076, %v1144
      %v1177 = vadd.f32 %v1077, %v1145
      %v1178 = vadd.f32 %v1078, %v1146
      %v1179 = vadd.f32 %v1079, %v1147
      %v1180 = vadd.f32 %v1080, %v1148
      %v1181 = vadd.f32 %v1081, %v1149
      %v1182 = vadd.f32 %v1082, %v1150
      %v1183 = vadd.f32 %v1083, %v1151
      %v1184 = vadd.f32 %v1084, %v1152
      %v1185 = vadd.f32 %v1085, %v1153
      %v1186 = vadd.f32 %v1086, %v1154
      %v1187 = vadd.f32 %v1087, %v1155
      %v1188 = vadd.f32 %v1088, %v1156
      %v1189 = vadd.f32 %v1089, %v1157
      %v1190 = vadd.f32 %v1090, %v1158
      %v1191 = vadd.f32 %v1091, %v1159
      %v1192 = vadd.f32 %v1092, %v1160
      %v1193 = vadd.f32 %v1093, %v1161
      %v1194 = vadd.f32 %v1094, %v1162
      %v1195 = vadd.f32 %v1095, %v1163
      %v1196 = vadd.f32 %v1096, %v1164
      %v1197 = vadd.f32 %v1097, %v1165
      %v1198 = vadd.f32 %v1098, %v1166
      %v1199 = vadd.f32 %v1099, %v1167
      %v1200 = vadd.f32 %v1100, %v1168
      %v1201 = vadd.f32 %v1101, %v1169
      %v1202 = vadd.f32 %v1102, %v1170
      %v1203 = vadd.f32 %v1103, %v1171
      %v1204 = vadd.f32 %v1104, %v1172
      %v1205 = vadd.f32 %v1105, %v1173
      %v1206 = vld [vmem:[%s740 + $0x1] sm:$0xff]
      %v1207 = vld [vmem:[%s740 + $0x9] sm:$0xff]
      %v1208 = vld [vmem:[%s740 + $0x19] sm:$0xff]
      %v1209 = vld [vmem:[%s740 + $0x21] sm:$0xff]
      %v1210 = vld [vmem:[%s740 + $0x31] sm:$0xff]
      %v1211 = vld [vmem:[%s740 + $0x39] sm:$0xff]
      %v1212 = vld [vmem:[%s740 + $0x49] sm:$0xff]
      %v1213 = vld [vmem:[%s740 + $0x51] sm:$0xff]
      %v1214 = vld [vmem:[%s740 + $0x61] sm:$0xff]
      %v1215 = vld [vmem:[%s740 + $0x69] sm:$0xff]
      %v1216 = vld [vmem:[%s740 + $0x79] sm:$0xff]
      %v1217 = vld [vmem:[%s740 + $0x81] sm:$0xff]
      %v1218 = vld [vmem:[%s740 + $0x91] sm:$0xff]
      %v1219 = vld [vmem:[%s740 + $0x99] sm:$0xff]
      %v1220 = vld [vmem:[%s740 + $0xa9] sm:$0xff]
      %v1221 = vld [vmem:[%s740 + $0xb1] sm:$0xff]
      %v1222 = vld [vmem:[%s740 + $0xc1] sm:$0xff]
      %v1223 = vld [vmem:[%s740 + $0xc9] sm:$0xff]
      %v1224 = vld [vmem:[%s740 + $0xd9] sm:$0xff]
      %v1225 = vld [vmem:[%s740 + $0xe1] sm:$0xff]
      %v1226 = vld [vmem:[%s740 + $0xf1] sm:$0xff]
      %v1227 = vld [vmem:[%s740 + $0xf9] sm:$0xff]
      %v1228 = vld [vmem:[%s740 + $0x109] sm:$0xff]
      %v1229 = vld [vmem:[%s740 + $0x111] sm:$0xff]
      %v1230 = vld [vmem:[%s740 + $0x121] sm:$0xff]
      %v1231 = vld [vmem:[%s740 + $0x129] sm:$0xff]
      %v1232 = vld [vmem:[%s740 + $0x139] sm:$0xff]
      %v1233 = vld [vmem:[%s740 + $0x141] sm:$0xff]
      %v1234 = vld [vmem:[%s740 + $0x151] sm:$0xff]
      %v1235 = vld [vmem:[%s740 + $0x159] sm:$0xff]
      %v1236 = vld [vmem:[%s740 + $0x169] sm:$0xff]
      %v1237 = vld [vmem:[%s740 + $0x171] sm:$0xff]
      %v1238 = vlaneseq
      %v1239 = vshrl.u32 %v1238, 7
      %v1240 = vsub.s32 4, %v1239
      %v1241 = vrot.slane %v728, %v1240
      %v1242 = vmul.f32 %v1206, %v1241
      %v1243 = vmul.f32 %v1207, %v1241
      %v1244 = vmul.f32 %v1208, %v1241
      %v1245 = vmul.f32 %v1209, %v1241
      %v1246 = vmul.f32 %v1210, %v1241
      %v1247 = vmul.f32 %v1211, %v1241
      %v1248 = vmul.f32 %v1212, %v1241
      %v1249 = vmul.f32 %v1213, %v1241
      %v1250 = vmul.f32 %v1214, %v1241
      %v1251 = vmul.f32 %v1215, %v1241
      %v1252 = vmul.f32 %v1216, %v1241
      %v1253 = vmul.f32 %v1217, %v1241
      %v1254 = vmul.f32 %v1218, %v1241
      %v1255 = vmul.f32 %v1219, %v1241
      %v1256 = vmul.f32 %v1220, %v1241
      %v1257 = vmul.f32 %v1221, %v1241
      %v1258 = vmul.f32 %v1222, %v1241
      %v1259 = vmul.f32 %v1223, %v1241
      %v1260 = vmul.f32 %v1224, %v1241
      %v1261 = vmul.f32 %v1225, %v1241
      %v1262 = vmul.f32 %v1226, %v1241
      %v1263 = vmul.f32 %v1227, %v1241
      %v1264 = vmul.f32 %v1228, %v1241
      %v1265 = vmul.f32 %v1229, %v1241
      %v1266 = vmul.f32 %v1230, %v1241
      %v1267 = vmul.f32 %v1231, %v1241
      %v1268 = vmul.f32 %v1232, %v1241
      %v1269 = vmul.f32 %v1233, %v1241
      %v1270 = vmul.f32 %v1234, %v1241
      %v1271 = vmul.f32 %v1235, %v1241
      %v1272 = vmul.f32 %v1236, %v1241
      %v1273 = vmul.f32 %v1237, %v1241
      %v1274 = vadd.f32 %v1174, %v1242
      %v1275 = vadd.f32 %v1175, %v1243
      %v1276 = vadd.f32 %v1176, %v1244
      %v1277 = vadd.f32 %v1177, %v1245
      %v1278 = vadd.f32 %v1178, %v1246
      %v1279 = vadd.f32 %v1179, %v1247
      %v1280 = vadd.f32 %v1180, %v1248
      %v1281 = vadd.f32 %v1181, %v1249
      %v1282 = vadd.f32 %v1182, %v1250
      %v1283 = vadd.f32 %v1183, %v1251
      %v1284 = vadd.f32 %v1184, %v1252
      %v1285 = vadd.f32 %v1185, %v1253
      %v1286 = vadd.f32 %v1186, %v1254
      %v1287 = vadd.f32 %v1187, %v1255
      %v1288 = vadd.f32 %v1188, %v1256
      %v1289 = vadd.f32 %v1189, %v1257
      %v1290 = vadd.f32 %v1190, %v1258
      %v1291 = vadd.f32 %v1191, %v1259
      %v1292 = vadd.f32 %v1192, %v1260
      %v1293 = vadd.f32 %v1193, %v1261
      %v1294 = vadd.f32 %v1194, %v1262
      %v1295 = vadd.f32 %v1195, %v1263
      %v1296 = vadd.f32 %v1196, %v1264
      %v1297 = vadd.f32 %v1197, %v1265
      %v1298 = vadd.f32 %v1198, %v1266
      %v1299 = vadd.f32 %v1199, %v1267
      %v1300 = vadd.f32 %v1200, %v1268
      %v1301 = vadd.f32 %v1201, %v1269
      %v1302 = vadd.f32 %v1202, %v1270
      %v1303 = vadd.f32 %v1203, %v1271
      %v1304 = vadd.f32 %v1204, %v1272
      %v1305 = vadd.f32 %v1205, %v1273
      %v1306 = vld [vmem:[%s740 + $0x2] sm:$0xff]
      %v1307 = vld [vmem:[%s740 + $0xa] sm:$0xff]
      %v1308 = vld [vmem:[%s740 + $0x1a] sm:$0xff]
      %v1309 = vld [vmem:[%s740 + $0x22] sm:$0xff]
      %v1310 = vld [vmem:[%s740 + $0x32] sm:$0xff]
      %v1311 = vld [vmem:[%s740 + $0x3a] sm:$0xff]
      %v1312 = vld [vmem:[%s740 + $0x4a] sm:$0xff]
      %v1313 = vld [vmem:[%s740 + $0x52] sm:$0xff]
      %v1314 = vld [vmem:[%s740 + $0x62] sm:$0xff]
      %v1315 = vld [vmem:[%s740 + $0x6a] sm:$0xff]
      %v1316 = vld [vmem:[%s740 + $0x7a] sm:$0xff]
      %v1317 = vld [vmem:[%s740 + $0x82] sm:$0xff]
      %v1318 = vld [vmem:[%s740 + $0x92] sm:$0xff]
      %v1319 = vld [vmem:[%s740 + $0x9a] sm:$0xff]
      %v1320 = vld [vmem:[%s740 + $0xaa] sm:$0xff]
      %v1321 = vld [vmem:[%s740 + $0xb2] sm:$0xff]
      %v1322 = vld [vmem:[%s740 + $0xc2] sm:$0xff]
      %v1323 = vld [vmem:[%s740 + $0xca] sm:$0xff]
      %v1324 = vld [vmem:[%s740 + $0xda] sm:$0xff]
      %v1325 = vld [vmem:[%s740 + $0xe2] sm:$0xff]
      %v1326 = vld [vmem:[%s740 + $0xf2] sm:$0xff]
      %v1327 = vld [vmem:[%s740 + $0xfa] sm:$0xff]
      %v1328 = vld [vmem:[%s740 + $0x10a] sm:$0xff]
      %v1329 = vld [vmem:[%s740 + $0x112] sm:$0xff]
      %v1330 = vld [vmem:[%s740 + $0x122] sm:$0xff]
      %v1331 = vld [vmem:[%s740 + $0x12a] sm:$0xff]
      %v1332 = vld [vmem:[%s740 + $0x13a] sm:$0xff]
      %v1333 = vld [vmem:[%s740 + $0x142] sm:$0xff]
      %v1334 = vld [vmem:[%s740 + $0x152] sm:$0xff]
      %v1335 = vld [vmem:[%s740 + $0x15a] sm:$0xff]
      %v1336 = vld [vmem:[%s740 + $0x16a] sm:$0xff]
      %v1337 = vld [vmem:[%s740 + $0x172] sm:$0xff]
      %v1338 = vlaneseq
      %v1339 = vshrl.u32 %v1338, 7
      %v1340 = vsub.s32 5, %v1339
      %v1341 = vrot.slane %v728, %v1340
      %v1342 = vmul.f32 %v1306, %v1341
      %v1343 = vmul.f32 %v1307, %v1341
      %v1344 = vmul.f32 %v1308, %v1341
      %v1345 = vmul.f32 %v1309, %v1341
      %v1346 = vmul.f32 %v1310, %v1341
      %v1347 = vmul.f32 %v1311, %v1341
      %v1348 = vmul.f32 %v1312, %v1341
      %v1349 = vmul.f32 %v1313, %v1341
      %v1350 = vmul.f32 %v1314, %v1341
      %v1351 = vmul.f32 %v1315, %v1341
      %v1352 = vmul.f32 %v1316, %v1341
      %v1353 = vmul.f32 %v1317, %v1341
      %v1354 = vmul.f32 %v1318, %v1341
      %v1355 = vmul.f32 %v1319, %v1341
      %v1356 = vmul.f32 %v1320, %v1341
      %v1357 = vmul.f32 %v1321, %v1341
      %v1358 = vmul.f32 %v1322, %v1341
      %v1359 = vmul.f32 %v1323, %v1341
      %v1360 = vmul.f32 %v1324, %v1341
      %v1361 = vmul.f32 %v1325, %v1341
      %v1362 = vmul.f32 %v1326, %v1341
      %v1363 = vmul.f32 %v1327, %v1341
      %v1364 = vmul.f32 %v1328, %v1341
      %v1365 = vmul.f32 %v1329, %v1341
      %v1366 = vmul.f32 %v1330, %v1341
      %v1367 = vmul.f32 %v1331, %v1341
      %v1368 = vmul.f32 %v1332, %v1341
      %v1369 = vmul.f32 %v1333, %v1341
      %v1370 = vmul.f32 %v1334, %v1341
      %v1371 = vmul.f32 %v1335, %v1341
      %v1372 = vmul.f32 %v1336, %v1341
      %v1373 = vmul.f32 %v1337, %v1341
      %v1374 = vadd.f32 %v1274, %v1342
      %v1375 = vadd.f32 %v1275, %v1343
      %v1376 = vadd.f32 %v1276, %v1344
      %v1377 = vadd.f32 %v1277, %v1345
      %v1378 = vadd.f32 %v1278, %v1346
      %v1379 = vadd.f32 %v1279, %v1347
      %v1380 = vadd.f32 %v1280, %v1348
      %v1381 = vadd.f32 %v1281, %v1349
      %v1382 = vadd.f32 %v1282, %v1350
      %v1383 = vadd.f32 %v1283, %v1351
      %v1384 = vadd.f32 %v1284, %v1352
      %v1385 = vadd.f32 %v1285, %v1353
      %v1386 = vadd.f32 %v1286, %v1354
      %v1387 = vadd.f32 %v1287, %v1355
      %v1388 = vadd.f32 %v1288, %v1356
      %v1389 = vadd.f32 %v1289, %v1357
      %v1390 = vadd.f32 %v1290, %v1358
      %v1391 = vadd.f32 %v1291, %v1359
      %v1392 = vadd.f32 %v1292, %v1360
      %v1393 = vadd.f32 %v1293, %v1361
      %v1394 = vadd.f32 %v1294, %v1362
      %v1395 = vadd.f32 %v1295, %v1363
      %v1396 = vadd.f32 %v1296, %v1364
      %v1397 = vadd.f32 %v1297, %v1365
      %v1398 = vadd.f32 %v1298, %v1366
      %v1399 = vadd.f32 %v1299, %v1367
      %v1400 = vadd.f32 %v1300, %v1368
      %v1401 = vadd.f32 %v1301, %v1369
      %v1402 = vadd.f32 %v1302, %v1370
      %v1403 = vadd.f32 %v1303, %v1371
      %v1404 = vadd.f32 %v1304, %v1372
      %v1405 = vadd.f32 %v1305, %v1373
      %s1406 = scalar_lea.vmem [#allocation2], 48
      %v1407 = vld [vmem:[%s1406] sm:$0xff]
      %v1408 = vld [vmem:[%s1406 + $0x8] sm:$0xff]
      %v1409 = vld [vmem:[%s1406 + $0x18] sm:$0xff]
      %v1410 = vld [vmem:[%s1406 + $0x20] sm:$0xff]
      %v1411 = vld [vmem:[%s1406 + $0x30] sm:$0xff]
      %v1412 = vld [vmem:[%s1406 + $0x38] sm:$0xff]
      %v1413 = vld [vmem:[%s1406 + $0x48] sm:$0xff]
      %v1414 = vld [vmem:[%s1406 + $0x50] sm:$0xff]
      %v1415 = vld [vmem:[%s1406 + $0x60] sm:$0xff]
      %v1416 = vld [vmem:[%s1406 + $0x68] sm:$0xff]
      %v1417 = vld [vmem:[%s1406 + $0x78] sm:$0xff]
      %v1418 = vld [vmem:[%s1406 + $0x80] sm:$0xff]
      %v1419 = vld [vmem:[%s1406 + $0x90] sm:$0xff]
      %v1420 = vld [vmem:[%s1406 + $0x98] sm:$0xff]
      %v1421 = vld [vmem:[%s1406 + $0xa8] sm:$0xff]
      %v1422 = vld [vmem:[%s1406 + $0xb0] sm:$0xff]
      %v1423 = vld [vmem:[%s1406 + $0xc0] sm:$0xff]
      %v1424 = vld [vmem:[%s1406 + $0xc8] sm:$0xff]
      %v1425 = vld [vmem:[%s1406 + $0xd8] sm:$0xff]
      %v1426 = vld [vmem:[%s1406 + $0xe0] sm:$0xff]
      %v1427 = vld [vmem:[%s1406 + $0xf0] sm:$0xff]
      %v1428 = vld [vmem:[%s1406 + $0xf8] sm:$0xff]
      %v1429 = vld [vmem:[%s1406 + $0x108] sm:$0xff]
      %v1430 = vld [vmem:[%s1406 + $0x110] sm:$0xff]
      %v1431 = vld [vmem:[%s1406 + $0x120] sm:$0xff]
      %v1432 = vld [vmem:[%s1406 + $0x128] sm:$0xff]
      %v1433 = vld [vmem:[%s1406 + $0x138] sm:$0xff]
      %v1434 = vld [vmem:[%s1406 + $0x140] sm:$0xff]
      %v1435 = vld [vmem:[%s1406 + $0x150] sm:$0xff]
      %v1436 = vld [vmem:[%s1406 + $0x158] sm:$0xff]
      %v1437 = vld [vmem:[%s1406 + $0x168] sm:$0xff]
      %v1438 = vld [vmem:[%s1406 + $0x170] sm:$0xff]
      %v1439 = vlaneseq
      %v1440 = vshrl.u32 %v1439, 7
      %v1441 = vsub.s32 6, %v1440
      %v1442 = vrot.slane %v728, %v1441
      %v1443 = vmul.f32 %v1407, %v1442
      %v1444 = vmul.f32 %v1408, %v1442
      %v1445 = vmul.f32 %v1409, %v1442
      %v1446 = vmul.f32 %v1410, %v1442
      %v1447 = vmul.f32 %v1411, %v1442
      %v1448 = vmul.f32 %v1412, %v1442
      %v1449 = vmul.f32 %v1413, %v1442
      %v1450 = vmul.f32 %v1414, %v1442
      %v1451 = vmul.f32 %v1415, %v1442
      %v1452 = vmul.f32 %v1416, %v1442
      %v1453 = vmul.f32 %v1417, %v1442
      %v1454 = vmul.f32 %v1418, %v1442
      %v1455 = vmul.f32 %v1419, %v1442
      %v1456 = vmul.f32 %v1420, %v1442
      %v1457 = vmul.f32 %v1421, %v1442
      %v1458 = vmul.f32 %v1422, %v1442
      %v1459 = vmul.f32 %v1423, %v1442
      %v1460 = vmul.f32 %v1424, %v1442
      %v1461 = vmul.f32 %v1425, %v1442
      %v1462 = vmul.f32 %v1426, %v1442
      %v1463 = vmul.f32 %v1427, %v1442
      %v1464 = vmul.f32 %v1428, %v1442
      %v1465 = vmul.f32 %v1429, %v1442
      %v1466 = vmul.f32 %v1430, %v1442
      %v1467 = vmul.f32 %v1431, %v1442
      %v1468 = vmul.f32 %v1432, %v1442
      %v1469 = vmul.f32 %v1433, %v1442
      %v1470 = vmul.f32 %v1434, %v1442
      %v1471 = vmul.f32 %v1435, %v1442
      %v1472 = vmul.f32 %v1436, %v1442
      %v1473 = vmul.f32 %v1437, %v1442
      %v1474 = vmul.f32 %v1438, %v1442
      %v1475 = vadd.f32 %v1374, %v1443
      %v1476 = vadd.f32 %v1375, %v1444
      %v1477 = vadd.f32 %v1376, %v1445
      %v1478 = vadd.f32 %v1377, %v1446
      %v1479 = vadd.f32 %v1378, %v1447
      %v1480 = vadd.f32 %v1379, %v1448
      %v1481 = vadd.f32 %v1380, %v1449
      %v1482 = vadd.f32 %v1381, %v1450
      %v1483 = vadd.f32 %v1382, %v1451
      %v1484 = vadd.f32 %v1383, %v1452
      %v1485 = vadd.f32 %v1384, %v1453
      %v1486 = vadd.f32 %v1385, %v1454
      %v1487 = vadd.f32 %v1386, %v1455
      %v1488 = vadd.f32 %v1387, %v1456
      %v1489 = vadd.f32 %v1388, %v1457
      %v1490 = vadd.f32 %v1389, %v1458
      %v1491 = vadd.f32 %v1390, %v1459
      %v1492 = vadd.f32 %v1391, %v1460
      %v1493 = vadd.f32 %v1392, %v1461
      %v1494 = vadd.f32 %v1393, %v1462
      %v1495 = vadd.f32 %v1394, %v1463
      %v1496 = vadd.f32 %v1395, %v1464
      %v1497 = vadd.f32 %v1396, %v1465
      %v1498 = vadd.f32 %v1397, %v1466
      %v1499 = vadd.f32 %v1398, %v1467
      %v1500 = vadd.f32 %v1399, %v1468
      %v1501 = vadd.f32 %v1400, %v1469
      %v1502 = vadd.f32 %v1401, %v1470
      %v1503 = vadd.f32 %v1402, %v1471
      %v1504 = vadd.f32 %v1403, %v1472
      %v1505 = vadd.f32 %v1404, %v1473
      %v1506 = vadd.f32 %v1405, %v1474
      %v1507 = vld [vmem:[%s1406 + $0x1] sm:$0xff]
      %v1508 = vld [vmem:[%s1406 + $0x9] sm:$0xff]
      %v1509 = vld [vmem:[%s1406 + $0x19] sm:$0xff]
      %v1510 = vld [vmem:[%s1406 + $0x21] sm:$0xff]
      %v1511 = vld [vmem:[%s1406 + $0x31] sm:$0xff]
      %v1512 = vld [vmem:[%s1406 + $0x39] sm:$0xff]
      %v1513 = vld [vmem:[%s1406 + $0x49] sm:$0xff]
      %v1514 = vld [vmem:[%s1406 + $0x51] sm:$0xff]
      %v1515 = vld [vmem:[%s1406 + $0x61] sm:$0xff]
      %v1516 = vld [vmem:[%s1406 + $0x69] sm:$0xff]
      %v1517 = vld [vmem:[%s1406 + $0x79] sm:$0xff]
      %v1518 = vld [vmem:[%s1406 + $0x81] sm:$0xff]
      %v1519 = vld [vmem:[%s1406 + $0x91] sm:$0xff]
      %v1520 = vld [vmem:[%s1406 + $0x99] sm:$0xff]
      %v1521 = vld [vmem:[%s1406 + $0xa9] sm:$0xff]
      %v1522 = vld [vmem:[%s1406 + $0xb1] sm:$0xff]
      %v1523 = vld [vmem:[%s1406 + $0xc1] sm:$0xff]
      %v1524 = vld [vmem:[%s1406 + $0xc9] sm:$0xff]
      %v1525 = vld [vmem:[%s1406 + $0xd9] sm:$0xff]
      %v1526 = vld [vmem:[%s1406 + $0xe1] sm:$0xff]
      %v1527 = vld [vmem:[%s1406 + $0xf1] sm:$0xff]
      %v1528 = vld [vmem:[%s1406 + $0xf9] sm:$0xff]
      %v1529 = vld [vmem:[%s1406 + $0x109] sm:$0xff]
      %v1530 = vld [vmem:[%s1406 + $0x111] sm:$0xff]
      %v1531 = vld [vmem:[%s1406 + $0x121] sm:$0xff]
      %v1532 = vld [vmem:[%s1406 + $0x129] sm:$0xff]
      %v1533 = vld [vmem:[%s1406 + $0x139] sm:$0xff]
      %v1534 = vld [vmem:[%s1406 + $0x141] sm:$0xff]
      %v1535 = vld [vmem:[%s1406 + $0x151] sm:$0xff]
      %v1536 = vld [vmem:[%s1406 + $0x159] sm:$0xff]
      %v1537 = vld [vmem:[%s1406 + $0x169] sm:$0xff]
      %v1538 = vld [vmem:[%s1406 + $0x171] sm:$0xff]
      %v1539 = vlaneseq
      %v1540 = vshrl.u32 %v1539, 7
      %v1541 = vsub.s32 7, %v1540
      %v1542 = vrot.slane %v728, %v1541
      %v1543 = vmul.f32 %v1507, %v1542
      %v1544 = vmul.f32 %v1508, %v1542
      %v1545 = vmul.f32 %v1509, %v1542
      %v1546 = vmul.f32 %v1510, %v1542
      %v1547 = vmul.f32 %v1511, %v1542
      %v1548 = vmul.f32 %v1512, %v1542
      %v1549 = vmul.f32 %v1513, %v1542
      %v1550 = vmul.f32 %v1514, %v1542
      %v1551 = vmul.f32 %v1515, %v1542
      %v1552 = vmul.f32 %v1516, %v1542
      %v1553 = vmul.f32 %v1517, %v1542
      %v1554 = vmul.f32 %v1518, %v1542
      %v1555 = vmul.f32 %v1519, %v1542
      %v1556 = vmul.f32 %v1520, %v1542
      %v1557 = vmul.f32 %v1521, %v1542
      %v1558 = vmul.f32 %v1522, %v1542
      %v1559 = vmul.f32 %v1523, %v1542
      %v1560 = vmul.f32 %v1524, %v1542
      %v1561 = vmul.f32 %v1525, %v1542
      %v1562 = vmul.f32 %v1526, %v1542
      %v1563 = vmul.f32 %v1527, %v1542
      %v1564 = vmul.f32 %v1528, %v1542
      %v1565 = vmul.f32 %v1529, %v1542
      %v1566 = vmul.f32 %v1530, %v1542
      %v1567 = vmul.f32 %v1531, %v1542
      %v1568 = vmul.f32 %v1532, %v1542
      %v1569 = vmul.f32 %v1533, %v1542
      %v1570 = vmul.f32 %v1534, %v1542
      %v1571 = vmul.f32 %v1535, %v1542
      %v1572 = vmul.f32 %v1536, %v1542
      %v1573 = vmul.f32 %v1537, %v1542
      %v1574 = vmul.f32 %v1538, %v1542
      %v1575 = vadd.f32 %v1475, %v1543
      %v1576 = vadd.f32 %v1476, %v1544
      %v1577 = vadd.f32 %v1477, %v1545
      %v1578 = vadd.f32 %v1478, %v1546
      %v1579 = vadd.f32 %v1479, %v1547
      %v1580 = vadd.f32 %v1480, %v1548
      %v1581 = vadd.f32 %v1481, %v1549
      %v1582 = vadd.f32 %v1482, %v1550
      %v1583 = vadd.f32 %v1483, %v1551
      %v1584 = vadd.f32 %v1484, %v1552
      %v1585 = vadd.f32 %v1485, %v1553
      %v1586 = vadd.f32 %v1486, %v1554
      %v1587 = vadd.f32 %v1487, %v1555
      %v1588 = vadd.f32 %v1488, %v1556
      %v1589 = vadd.f32 %v1489, %v1557
      %v1590 = vadd.f32 %v1490, %v1558
      %v1591 = vadd.f32 %v1491, %v1559
      %v1592 = vadd.f32 %v1492, %v1560
      %v1593 = vadd.f32 %v1493, %v1561
      %v1594 = vadd.f32 %v1494, %v1562
      %v1595 = vadd.f32 %v1495, %v1563
      %v1596 = vadd.f32 %v1496, %v1564
      %v1597 = vadd.f32 %v1497, %v1565
      %v1598 = vadd.f32 %v1498, %v1566
      %v1599 = vadd.f32 %v1499, %v1567
      %v1600 = vadd.f32 %v1500, %v1568
      %v1601 = vadd.f32 %v1501, %v1569
      %v1602 = vadd.f32 %v1502, %v1570
      %v1603 = vadd.f32 %v1503, %v1571
      %v1604 = vadd.f32 %v1504, %v1572
      %v1605 = vadd.f32 %v1505, %v1573
      %v1606 = vadd.f32 %v1506, %v1574
      %v1607 = vld [vmem:[%s1406 + $0x2] sm:$0xff]
      %v1608 = vld [vmem:[%s1406 + $0xa] sm:$0xff]
      %v1609 = vld [vmem:[%s1406 + $0x1a] sm:$0xff]
      %v1610 = vld [vmem:[%s1406 + $0x22] sm:$0xff]
      %v1611 = vld [vmem:[%s1406 + $0x32] sm:$0xff]
      %v1612 = vld [vmem:[%s1406 + $0x3a] sm:$0xff]
      %v1613 = vld [vmem:[%s1406 + $0x4a] sm:$0xff]
      %v1614 = vld [vmem:[%s1406 + $0x52] sm:$0xff]
      %v1615 = vld [vmem:[%s1406 + $0x62] sm:$0xff]
      %v1616 = vld [vmem:[%s1406 + $0x6a] sm:$0xff]
      %v1617 = vld [vmem:[%s1406 + $0x7a] sm:$0xff]
      %v1618 = vld [vmem:[%s1406 + $0x82] sm:$0xff]
      %v1619 = vld [vmem:[%s1406 + $0x92] sm:$0xff]
      %v1620 = vld [vmem:[%s1406 + $0x9a] sm:$0xff]
      %v1621 = vld [vmem:[%s1406 + $0xaa] sm:$0xff]
      %v1622 = vld [vmem:[%s1406 + $0xb2] sm:$0xff]
      %v1623 = vld [vmem:[%s1406 + $0xc2] sm:$0xff]
      %v1624 = vld [vmem:[%s1406 + $0xca] sm:$0xff]
      %v1625 = vld [vmem:[%s1406 + $0xda] sm:$0xff]
      %v1626 = vld [vmem:[%s1406 + $0xe2] sm:$0xff]
      %v1627 = vld [vmem:[%s1406 + $0xf2] sm:$0xff]
      %v1628 = vld [vmem:[%s1406 + $0xfa] sm:$0xff]
      %v1629 = vld [vmem:[%s1406 + $0x10a] sm:$0xff]
      %v1630 = vld [vmem:[%s1406 + $0x112] sm:$0xff]
      %v1631 = vld [vmem:[%s1406 + $0x122] sm:$0xff]
      %v1632 = vld [vmem:[%s1406 + $0x12a] sm:$0xff]
      %v1633 = vld [vmem:[%s1406 + $0x13a] sm:$0xff]
      %v1634 = vld [vmem:[%s1406 + $0x142] sm:$0xff]
      %v1635 = vld [vmem:[%s1406 + $0x152] sm:$0xff]
      %v1636 = vld [vmem:[%s1406 + $0x15a] sm:$0xff]
      %v1637 = vld [vmem:[%s1406 + $0x16a] sm:$0xff]
      %v1638 = vld [vmem:[%s1406 + $0x172] sm:$0xff]
      %v1639 = vlaneseq
      %v1640 = vshrl.u32 %v1639, 7
      %v1641 = vsub.s32 0, %v1640
      %v1642 = vrot.slane %v729, %v1641
      %v1643 = vmul.f32 %v1607, %v1642
      %v1644 = vmul.f32 %v1608, %v1642
      %v1645 = vmul.f32 %v1609, %v1642
      %v1646 = vmul.f32 %v1610, %v1642
      %v1647 = vmul.f32 %v1611, %v1642
      %v1648 = vmul.f32 %v1612, %v1642
      %v1649 = vmul.f32 %v1613, %v1642
      %v1650 = vmul.f32 %v1614, %v1642
      %v1651 = vmul.f32 %v1615, %v1642
      %v1652 = vmul.f32 %v1616, %v1642
      %v1653 = vmul.f32 %v1617, %v1642
      %v1654 = vmul.f32 %v1618, %v1642
      %v1655 = vmul.f32 %v1619, %v1642
      %v1656 = vmul.f32 %v1620, %v1642
      %v1657 = vmul.f32 %v1621, %v1642
      %v1658 = vmul.f32 %v1622, %v1642
      %v1659 = vmul.f32 %v1623, %v1642
      %v1660 = vmul.f32 %v1624, %v1642
      %v1661 = vmul.f32 %v1625, %v1642
      %v1662 = vmul.f32 %v1626, %v1642
      %v1663 = vmul.f32 %v1627, %v1642
      %v1664 = vmul.f32 %v1628, %v1642
      %v1665 = vmul.f32 %v1629, %v1642
      %v1666 = vmul.f32 %v1630, %v1642
      %v1667 = vmul.f32 %v1631, %v1642
      %v1668 = vmul.f32 %v1632, %v1642
      %v1669 = vmul.f32 %v1633, %v1642
      %v1670 = vmul.f32 %v1634, %v1642
      %v1671 = vmul.f32 %v1635, %v1642
      %v1672 = vmul.f32 %v1636, %v1642
      %v1673 = vmul.f32 %v1637, %v1642
      %v1674 = vmul.f32 %v1638, %v1642
      %v1675 = vadd.f32 %v1575, %v1643
      %v1676 = vadd.f32 %v1576, %v1644
      %v1677 = vadd.f32 %v1577, %v1645
      %v1678 = vadd.f32 %v1578, %v1646
      %v1679 = vadd.f32 %v1579, %v1647
      %v1680 = vadd.f32 %v1580, %v1648
      %v1681 = vadd.f32 %v1581, %v1649
      %v1682 = vadd.f32 %v1582, %v1650
      %v1683 = vadd.f32 %v1583, %v1651
      %v1684 = vadd.f32 %v1584, %v1652
      %v1685 = vadd.f32 %v1585, %v1653
      %v1686 = vadd.f32 %v1586, %v1654
      %v1687 = vadd.f32 %v1587, %v1655
      %v1688 = vadd.f32 %v1588, %v1656
      %v1689 = vadd.f32 %v1589, %v1657
      %v1690 = vadd.f32 %v1590, %v1658
      %v1691 = vadd.f32 %v1591, %v1659
      %v1692 = vadd.f32 %v1592, %v1660
      %v1693 = vadd.f32 %v1593, %v1661
      %v1694 = vadd.f32 %v1594, %v1662
      %v1695 = vadd.f32 %v1595, %v1663
      %v1696 = vadd.f32 %v1596, %v1664
      %v1697 = vadd.f32 %v1597, %v1665
      %v1698 = vadd.f32 %v1598, %v1666
      %v1699 = vadd.f32 %v1599, %v1667
      %v1700 = vadd.f32 %v1600, %v1668
      %v1701 = vadd.f32 %v1601, %v1669
      %v1702 = vadd.f32 %v1602, %v1670
      %v1703 = vadd.f32 %v1603, %v1671
      %v1704 = vadd.f32 %v1604, %v1672
      %v1705 = vadd.f32 %v1605, %v1673
      %v1706 = vadd.f32 %v1606, %v1674
      %v1708 = vlaneseq
      %v1709 = vshrl.u32 %v1708, 7
      %v1710 = vsub.s32 0, %v1709
      %v1711 = vrot.slane %v730, %v1710
      %v1713 = vadd.f32 %v1675, %v1711
      %v1714 = vadd.f32 %v1676, %v1711
      %v1715 = vadd.f32 %v1677, %v1711
      %v1716 = vadd.f32 %v1678, %v1711
      %v1717 = vadd.f32 %v1679, %v1711
      %v1718 = vadd.f32 %v1680, %v1711
      %v1719 = vadd.f32 %v1681, %v1711
      %v1720 = vadd.f32 %v1682, %v1711
      %v1721 = vadd.f32 %v1683, %v1711
      %v1722 = vadd.f32 %v1684, %v1711
      %v1723 = vadd.f32 %v1685, %v1711
      %v1724 = vadd.f32 %v1686, %v1711
      %v1725 = vadd.f32 %v1687, %v1711
      %v1726 = vadd.f32 %v1688, %v1711
      %v1727 = vadd.f32 %v1689, %v1711
      %v1728 = vadd.f32 %v1690, %v1711
      %v1729 = vadd.f32 %v1691, %v1711
      %v1730 = vadd.f32 %v1692, %v1711
      %v1731 = vadd.f32 %v1693, %v1711
      %v1732 = vadd.f32 %v1694, %v1711
      %v1733 = vadd.f32 %v1695, %v1711
      %v1734 = vadd.f32 %v1696, %v1711
      %v1735 = vadd.f32 %v1697, %v1711
      %v1736 = vadd.f32 %v1698, %v1711
      %v1737 = vadd.f32 %v1699, %v1711
      %v1738 = vadd.f32 %v1700, %v1711
      %v1739 = vadd.f32 %v1701, %v1711
      %v1740 = vadd.f32 %v1702, %v1711
      %v1741 = vadd.f32 %v1703, %v1711
      %v1742 = vadd.f32 %v1704, %v1711
      %v1743 = vadd.f32 %v1705, %v1711
      %v1744 = vadd.f32 %v1706, %v1711
      %v1745 = vld [vmem:[%s5] sm:$0xff]
      %v1746 = vld [vmem:[%s5 + $0x8] sm:$0xff]
      %v1747 = vld [vmem:[%s6] sm:$0xff]
      %v1749 = vsel %vm731, %v1713, 0
      %v1752 = vsel %vm731, %v1714, 0
      %v1755 = vsel %vm731, %v1715, 0
      %v1758 = vsel %vm731, %v1716, 0
      %v1761 = vsel %vm731, %v1717, 0
      %v1764 = vsel %vm731, %v1718, 0
      %v1767 = vsel %vm731, %v1719, 0
      %v1770 = vsel %vm731, %v1720, 0
      %v1773 = vsel %vm731, %v1721, 0
      %v1776 = vsel %vm731, %v1722, 0
      %v1779 = vsel %vm731, %v1723, 0
      %v1782 = vsel %vm731, %v1724, 0
      %v1785 = vsel %vm731, %v1725, 0
      %v1788 = vsel %vm731, %v1726, 0
      %v1791 = vsel %vm731, %v1727, 0
      %v1794 = vsel %vm731, %v1728, 0
      %v1797 = vsel %vm731, %v1729, 0
      %v1800 = vsel %vm731, %v1730, 0
      %v1803 = vsel %vm731, %v1731, 0
      %v1806 = vsel %vm731, %v1732, 0
      %v1809 = vsel %vm731, %v1733, 0
      %v1812 = vsel %vm731, %v1734, 0
      %v1815 = vsel %vm731, %v1735, 0
      %v1818 = vsel %vm731, %v1736, 0
      %v1821 = vsel %vm731, %v1737, 0
      %v1824 = vsel %vm731, %v1738, 0
      %v1827 = vsel %vm731, %v1739, 0
      %v1830 = vsel %vm731, %v1740, 0
      %v1833 = vsel %vm731, %v1741, 0
      %v1836 = vsel %vm731, %v1742, 0
      %v1839 = vsel %vm731, %v1743, 0
      %v1842 = vsel %vm731, %v1744, 0
      %1844 = vmatprep.subr.mxu0 0.0
      %1845 = vmatpush1.msra.mxu0 %v1747
      %1846 = vmatprep.subr.mxu0 0.0
      %1847 = vmatpush1.msra.mxu0 0.0
      %1848 = vmatprep.subr.mxu0 0.0
      %1849 = vmatpush1.msra.mxu0 0.0
      %1850 = vmatprep.subr.mxu0 0.0
      %1851 = vmatpush1.msra.mxu0 0.0
      %1852 = vmatprep.subr.mxu0 0.0
      %1853 = vmatpush1.msra.mxu0 0.0
      %1854 = vmatprep.subr.mxu0 0.0
      %1855 = vmatpush1.msra.mxu0 0.0
      %1856 = vmatprep.subr.mxu0 0.0
      %1857 = vmatpush1.msra.mxu0 0.0
      %1858 = vmatprep.subr.mxu0 0.0
      %1859 = vmatpush1.msra.mxu0 0.0
      %1860 = vmatprep.subr.mxu0 0.0
      %1861 = vmatpush1.msra.mxu0 0.0
      %1862 = vmatprep.subr.mxu0 0.0
      %1863 = vmatpush1.msra.mxu0 0.0
      %1864 = vmatprep.subr.mxu0 0.0
      %1865 = vmatpush1.msra.mxu0 0.0
      %1866 = vmatprep.subr.mxu0 0.0
      %1867 = vmatpush1.msra.mxu0 0.0
      %1868 = vmatprep.subr.mxu0 0.0
      %1869 = vmatpush1.msra.mxu0 0.0
      %1870 = vmatprep.subr.mxu0 0.0
      %1871 = vmatpush1.msra.mxu0 0.0
      %1872 = vmatprep.subr.mxu0 0.0
      %1873 = vmatpush1.msra.mxu0 0.0
      %1874 = vmatprep.subr.mxu0 0.0
      %1875 = vmatpush1.msra.mxu0 0.0
      %1876 = vmatprep.subr.mxu0 0.0
      %1877 = vmatpush1.msra.mxu0 0.0
      %1878 = vmatprep.subr.mxu0 0.0
      %1879 = vmatpush1.msra.mxu0 0.0
      %1880 = vmatprep.subr.mxu0 0.0
      %1881 = vmatpush1.msra.mxu0 0.0
      %1882 = vmatprep.subr.mxu0 0.0
      %1883 = vmatpush1.msra.mxu0 0.0
      %1884 = vmatprep.subr.mxu0 0.0
      %1885 = vmatpush1.msra.mxu0 0.0
      %1886 = vmatprep.subr.mxu0 0.0
      %1887 = vmatpush1.msra.mxu0 0.0
      %1888 = vmatprep.subr.mxu0 0.0
      %1889 = vmatpush1.msra.mxu0 0.0
      %1890 = vmatprep.subr.mxu0 0.0
      %1891 = vmatpush1.msra.mxu0 0.0
      %1892 = vmatprep.subr.mxu0 0.0
      %1893 = vmatpush1.msra.mxu0 0.0
      %1894 = vmatprep.subr.mxu0 0.0
      %1895 = vmatpush1.msra.mxu0 0.0
      %1896 = vmatprep.subr.mxu0 0.0
      %1897 = vmatpush1.msra.mxu0 0.0
      %1898 = vmatprep.subr.mxu0 0.0
      %1899 = vmatpush1.msra.mxu0 0.0
      %1900 = vmatprep.subr.mxu0 0.0
      %1901 = vmatpush1.msra.mxu0 0.0
      %1902 = vmatprep.subr.mxu0 0.0
      %1903 = vmatpush1.msra.mxu0 0.0
      %1904 = vmatprep.subr.mxu0 0.0
      %1905 = vmatpush1.msra.mxu0 0.0
      %1906 = vmatprep.subr.mxu0 0.0
      %1907 = vmatpush1.msra.mxu0 0.0
      %1908 = vmatprep.mubr.f32.mxu0 0.0
      %1909 = vmatmul.mubr.f32.gmra.mrb[0].mxu0 %v1749
      %v1910 = vpop.f32.mrb[0].mxu0
      %v1911 = vadd.f32 0.0, %v1910
      %v1912 = vpop.f32.mrb[0].mxu0
      %1913 = vmatprep.mubr.f32.mxu0 0.0
      %1914 = vmatmul.mubr.f32.gmra.mrb[0].mxu0 %v1752
      %v1915 = vpop.f32.mrb[0].mxu0
      %v1916 = vadd.f32 0.0, %v1915
      %v1917 = vpop.f32.mrb[0].mxu0
      %1918 = vmatprep.mubr.f32.mxu0 0.0
      %1919 = vmatmul.mubr.f32.gmra.mrb[0].mxu0 %v1755
      %v1920 = vpop.f32.mrb[0].mxu0
      %v1921 = vadd.f32 0.0, %v1920
      %v1922 = vpop.f32.mrb[0].mxu0
      %1923 = vmatprep.mubr.f32.mxu0 0.0
      %1924 = vmatmul.mubr.f32.gmra.mrb[0].mxu0 %v1758
      %v1925 = vpop.f32.mrb[0].mxu0
      %v1926 = vadd.f32 0.0, %v1925
      %v1927 = vpop.f32.mrb[0].mxu0
      %1928 = vmatprep.mubr.f32.mxu0 0.0
      %1929 = vmatmul.mubr.f32.gmra.mrb[0].mxu0 %v1761
      %v1930 = vpop.f32.mrb[0].mxu0
      %v1931 = vadd.f32 0.0, %v1930
      %v1932 = vpop.f32.mrb[0].mxu0
      %1933 = vmatprep.mubr.f32.mxu0 0.0
      %1934 = vmatmul.mubr.f32.gmra.mrb[0].mxu0 %v1764
      %v1935 = vpop.f32.mrb[0].mxu0
      %v1936 = vadd.f32 0.0, %v1935
      %v1937 = vpop.f32.mrb[0].mxu0
      %1938 = vmatprep.mubr.f32.mxu0 0.0
      %1939 = vmatmul.mubr.f32.gmra.mrb[0].mxu0 %v1767
      %v1940 = vpop.f32.mrb[0].mxu0
      %v1941 = vadd.f32 0.0, %v1940
      %v1942 = vpop.f32.mrb[0].mxu0
      %1943 = vmatprep.mubr.f32.mxu0 0.0
      %1944 = vmatmul.mubr.f32.gmra.mrb[0].mxu0 %v1770
      %v1945 = vpop.f32.mrb[0].mxu0
      %v1946 = vadd.f32 0.0, %v1945
      %v1947 = vpop.f32.mrb[0].mxu0
      %1948 = vmatprep.mubr.f32.mxu0 0.0
      %1949 = vmatmul.mubr.f32.gmra.mrb[0].mxu0 %v1773
      %v1950 = vpop.f32.mrb[0].mxu0
      %v1951 = vadd.f32 0.0, %v1950
      %v1952 = vpop.f32.mrb[0].mxu0
      %1953 = vmatprep.mubr.f32.mxu0 0.0
      %1954 = vmatmul.mubr.f32.gmra.mrb[0].mxu0 %v1776
      %v1955 = vpop.f32.mrb[0].mxu0
      %v1956 = vadd.f32 0.0, %v1955
      %v1957 = vpop.f32.mrb[0].mxu0
      %1958 = vmatprep.mubr.f32.mxu0 0.0
      %1959 = vmatmul.mubr.f32.gmra.mrb[0].mxu0 %v1779
      %v1960 = vpop.f32.mrb[0].mxu0
      %v1961 = vadd.f32 0.0, %v1960
      %v1962 = vpop.f32.mrb[0].mxu0
      %1963 = vmatprep.mubr.f32.mxu0 0.0
      %1964 = vmatmul.mubr.f32.gmra.mrb[0].mxu0 %v1782
      %v1965 = vpop.f32.mrb[0].mxu0
      %v1966 = vadd.f32 0.0, %v1965
      %v1967 = vpop.f32.mrb[0].mxu0
      %1968 = vmatprep.mubr.f32.mxu0 0.0
      %1969 = vmatmul.mubr.f32.gmra.mrb[0].mxu0 %v1785
      %v1970 = vpop.f32.mrb[0].mxu0
      %v1971 = vadd.f32 0.0, %v1970
      %v1972 = vpop.f32.mrb[0].mxu0
      %1973 = vmatprep.mubr.f32.mxu0 0.0
      %1974 = vmatmul.mubr.f32.gmra.mrb[0].mxu0 %v1788
      %v1975 = vpop.f32.mrb[0].mxu0
      %v1976 = vadd.f32 0.0, %v1975
      %v1977 = vpop.f32.mrb[0].mxu0
      %1978 = vmatprep.mubr.f32.mxu0 0.0
      %1979 = vmatmul.mubr.f32.gmra.mrb[0].mxu0 %v1791
      %v1980 = vpop.f32.mrb[0].mxu0
      %v1981 = vadd.f32 0.0, %v1980
      %v1982 = vpop.f32.mrb[0].mxu0
      %1983 = vmatprep.mubr.f32.mxu0 0.0
      %1984 = vmatmul.mubr.f32.gmra.mrb[0].mxu0 %v1794
      %v1985 = vpop.f32.mrb[0].mxu0
      %v1986 = vadd.f32 0.0, %v1985
      %v1987 = vpop.f32.mrb[0].mxu0
      %1988 = vmatprep.mubr.f32.mxu0 0.0
      %1989 = vmatmul.mubr.f32.gmra.mrb[0].mxu0 %v1797
      %v1990 = vpop.f32.mrb[0].mxu0
      %v1991 = vadd.f32 0.0, %v1990
      %v1992 = vpop.f32.mrb[0].mxu0
      %1993 = vmatprep.mubr.f32.mxu0 0.0
      %1994 = vmatmul.mubr.f32.gmra.mrb[0].mxu0 %v1800
      %v1995 = vpop.f32.mrb[0].mxu0
      %v1996 = vadd.f32 0.0, %v1995
      %v1997 = vpop.f32.mrb[0].mxu0
      %1998 = vmatprep.mubr.f32.mxu0 0.0
      %1999 = vmatmul.mubr.f32.gmra.mrb[0].mxu0 %v1803
      %v2000 = vpop.f32.mrb[0].mxu0
      %v2001 = vadd.f32 0.0, %v2000
      %v2002 = vpop.f32.mrb[0].mxu0
      %2003 = vmatprep.mubr.f32.mxu0 0.0
      %2004 = vmatmul.mubr.f32.gmra.mrb[0].mxu0 %v1806
      %v2005 = vpop.f32.mrb[0].mxu0
      %v2006 = vadd.f32 0.0, %v2005
      %v2007 = vpop.f32.mrb[0].mxu0
      %2008 = vmatprep.mubr.f32.mxu0 0.0
      %2009 = vmatmul.mubr.f32.gmra.mrb[0].mxu0 %v1809
      %v2010 = vpop.f32.mrb[0].mxu0
      %v2011 = vadd.f32 0.0, %v2010
      %v2012 = vpop.f32.mrb[0].mxu0
      %2013 = vmatprep.mubr.f32.mxu0 0.0
      %2014 = vmatmul.mubr.f32.gmra.mrb[0].mxu0 %v1812
      %v2015 = vpop.f32.mrb[0].mxu0
      %v2016 = vadd.f32 0.0, %v2015
      %v2017 = vpop.f32.mrb[0].mxu0
      %2018 = vmatprep.mubr.f32.mxu0 0.0
      %2019 = vmatmul.mubr.f32.gmra.mrb[0].mxu0 %v1815
      %v2020 = vpop.f32.mrb[0].mxu0
      %v2021 = vadd.f32 0.0, %v2020
      %v2022 = vpop.f32.mrb[0].mxu0
      %2023 = vmatprep.mubr.f32.mxu0 0.0
      %2024 = vmatmul.mubr.f32.gmra.mrb[0].mxu0 %v1818
      %v2025 = vpop.f32.mrb[0].mxu0
      %v2026 = vadd.f32 0.0, %v2025
      %v2027 = vpop.f32.mrb[0].mxu0
      %2028 = vmatprep.mubr.f32.mxu0 0.0
      %2029 = vmatmul.mubr.f32.gmra.mrb[0].mxu0 %v1821
      %v2030 = vpop.f32.mrb[0].mxu0
      %v2031 = vadd.f32 0.0, %v2030
      %v2032 = vpop.f32.mrb[0].mxu0
      %2033 = vmatprep.mubr.f32.mxu0 0.0
      %2034 = vmatmul.mubr.f32.gmra.mrb[0].mxu0 %v1824
      %v2035 = vpop.f32.mrb[0].mxu0
      %v2036 = vadd.f32 0.0, %v2035
      %v2037 = vpop.f32.mrb[0].mxu0
      %2038 = vmatprep.mubr.f32.mxu0 0.0
      %2039 = vmatmul.mubr.f32.gmra.mrb[0].mxu0 %v1827
      %v2040 = vpop.f32.mrb[0].mxu0
      %v2041 = vadd.f32 0.0, %v2040
      %v2042 = vpop.f32.mrb[0].mxu0
      %2043 = vmatprep.mubr.f32.mxu0 0.0
      %2044 = vmatmul.mubr.f32.gmra.mrb[0].mxu0 %v1830
      %v2045 = vpop.f32.mrb[0].mxu0
      %v2046 = vadd.f32 0.0, %v2045
      %v2047 = vpop.f32.mrb[0].mxu0
      %2048 = vmatprep.mubr.f32.mxu0 0.0
      %2049 = vmatmul.mubr.f32.gmra.mrb[0].mxu0 %v1833
      %v2050 = vpop.f32.mrb[0].mxu0
      %v2051 = vadd.f32 0.0, %v2050
      %v2052 = vpop.f32.mrb[0].mxu0
      %2053 = vmatprep.mubr.f32.mxu0 0.0
      %2054 = vmatmul.mubr.f32.gmra.mrb[0].mxu0 %v1836
      %v2055 = vpop.f32.mrb[0].mxu0
      %v2056 = vadd.f32 0.0, %v2055
      %v2057 = vpop.f32.mrb[0].mxu0
      %2058 = vmatprep.mubr.f32.mxu0 0.0
      %2059 = vmatmul.mubr.f32.gmra.mrb[0].mxu0 %v1839
      %v2060 = vpop.f32.mrb[0].mxu0
      %v2061 = vadd.f32 0.0, %v2060
      %v2062 = vpop.f32.mrb[0].mxu0
      %2063 = vmatprep.mubr.f32.mxu0 0.0
      %2064 = vmatmul.mubr.f32.gmra.mrb[0].mxu0 %v1842
      %v2065 = vpop.f32.mrb[0].mxu0
      %v2066 = vadd.f32 0.0, %v2065
      %v2067 = vpop.f32.mrb[0].mxu0
      %2068 = vdwg.mxu0
      %2069 = vmatprep.subr.mxu0 0.0
      %2070 = vmatpush1.msra.mxu0 %v1745
      %2071 = vmatprep.subr.mxu0 0.0
      %2072 = vmatpush1.msra.mxu0 %v1746
      %2073 = vmatprep.subr.mxu0 0.0
      %2074 = vmatpush1.msra.mxu0 0.0
      %2075 = vmatprep.subr.mxu0 0.0
      %2076 = vmatpush1.msra.mxu0 0.0
      %2077 = vmatprep.subr.mxu0 0.0
      %2078 = vmatpush1.msra.mxu0 0.0
      %2079 = vmatprep.subr.mxu0 0.0
      %2080 = vmatpush1.msra.mxu0 0.0
      %2081 = vmatprep.subr.mxu0 0.0
      %2082 = vmatpush1.msra.mxu0 0.0
      %2083 = vmatprep.subr.mxu0 0.0
      %2084 = vmatpush1.msra.mxu0 0.0
      %2085 = vmatprep.subr.mxu0 0.0
      %2086 = vmatpush1.msra.mxu0 0.0
      %2087 = vmatprep.subr.mxu0 0.0
      %2088 = vmatpush1.msra.mxu0 0.0
      %2089 = vmatprep.subr.mxu0 0.0
      %2090 = vmatpush1.msra.mxu0 0.0
      %2091 = vmatprep.subr.mxu0 0.0
      %2092 = vmatpush1.msra.mxu0 0.0
      %2093 = vmatprep.subr.mxu0 0.0
      %2094 = vmatpush1.msra.mxu0 0.0
      %2095 = vmatprep.subr.mxu0 0.0
      %2096 = vmatpush1.msra.mxu0 0.0
      %2097 = vmatprep.subr.mxu0 0.0
      %2098 = vmatpush1.msra.mxu0 0.0
      %2099 = vmatprep.subr.mxu0 0.0
      %2100 = vmatpush1.msra.mxu0 0.0
      %2101 = vmatprep.subr.mxu0 0.0
      %2102 = vmatpush1.msra.mxu0 0.0
      %2103 = vmatprep.subr.mxu0 0.0
      %2104 = vmatpush1.msra.mxu0 0.0
      %2105 = vmatprep.subr.mxu0 0.0
      %2106 = vmatpush1.msra.mxu0 0.0
      %2107 = vmatprep.subr.mxu0 0.0
      %2108 = vmatpush1.msra.mxu0 0.0
      %2109 = vmatprep.subr.mxu0 0.0
      %2110 = vmatpush1.msra.mxu0 0.0
      %2111 = vmatprep.subr.mxu0 0.0
      %2112 = vmatpush1.msra.mxu0 0.0
      %2113 = vmatprep.subr.mxu0 0.0
      %2114 = vmatpush1.msra.mxu0 0.0
      %2115 = vmatprep.subr.mxu0 0.0
      %2116 = vmatpush1.msra.mxu0 0.0
      %2117 = vmatprep.subr.mxu0 0.0
      %2118 = vmatpush1.msra.mxu0 0.0
      %2119 = vmatprep.subr.mxu0 0.0
      %2120 = vmatpush1.msra.mxu0 0.0
      %2121 = vmatprep.subr.mxu0 0.0
      %2122 = vmatpush1.msra.mxu0 0.0
      %2123 = vmatprep.subr.mxu0 0.0
      %2124 = vmatpush1.msra.mxu0 0.0
      %2125 = vmatprep.subr.mxu0 0.0
      %2126 = vmatpush1.msra.mxu0 0.0
      %2127 = vmatprep.subr.mxu0 0.0
      %2128 = vmatpush1.msra.mxu0 0.0
      %2129 = vmatprep.subr.mxu0 0.0
      %2130 = vmatpush1.msra.mxu0 0.0
      %2131 = vmatprep.subr.mxu0 0.0
      %2132 = vmatpush1.msra.mxu0 0.0
      %2133 = vmatprep.mubr.f32.mxu0 0.0
      %2134 = vmatmul.mubr.f32.gmra.mrb[0].mxu0 %v376
      %v2135 = vpop.f32.mrb[0].mxu0
      %v2136 = vadd.f32 %v1911, %v2135
      %v2137 = vpop.f32.mrb[0].mxu0
      %2138 = vmatprep.mubr.f32.mxu0 0.0
      %2139 = vmatmul.mubr.f32.gmra.mrb[0].mxu0 %v379
      %v2140 = vpop.f32.mrb[0].mxu0
      %v2141 = vadd.f32 %v1916, %v2140
      %v2142 = vpop.f32.mrb[0].mxu0
      %2143 = vmatprep.mubr.f32.mxu0 0.0
      %2144 = vmatmul.mubr.f32.gmra.mrb[0].mxu0 %v382
      %v2145 = vpop.f32.mrb[0].mxu0
      %v2146 = vadd.f32 %v1921, %v2145
      %v2147 = vpop.f32.mrb[0].mxu0
      %2148 = vmatprep.mubr.f32.mxu0 0.0
      %2149 = vmatmul.mubr.f32.gmra.mrb[0].mxu0 %v385
      %v2150 = vpop.f32.mrb[0].mxu0
      %v2151 = vadd.f32 %v1926, %v2150
      %v2152 = vpop.f32.mrb[0].mxu0
      %2153 = vmatprep.mubr.f32.mxu0 0.0
      %2154 = vmatmul.mubr.f32.gmra.mrb[0].mxu0 %v388
      %v2155 = vpop.f32.mrb[0].mxu0
      %v2156 = vadd.f32 %v1931, %v2155
      %v2157 = vpop.f32.mrb[0].mxu0
      %2158 = vmatprep.mubr.f32.mxu0 0.0
      %2159 = vmatmul.mubr.f32.gmra.mrb[0].mxu0 %v391
      %v2160 = vpop.f32.mrb[0].mxu0
      %v2161 = vadd.f32 %v1936, %v2160
      %v2162 = vpop.f32.mrb[0].mxu0
      %2163 = vmatprep.mubr.f32.mxu0 0.0
      %2164 = vmatmul.mubr.f32.gmra.mrb[0].mxu0 %v394
      %v2165 = vpop.f32.mrb[0].mxu0
      %v2166 = vadd.f32 %v1941, %v2165
      %v2167 = vpop.f32.mrb[0].mxu0
      %2168 = vmatprep.mubr.f32.mxu0 0.0
      %2169 = vmatmul.mubr.f32.gmra.mrb[0].mxu0 %v397
      %v2170 = vpop.f32.mrb[0].mxu0
      %v2171 = vadd.f32 %v1946, %v2170
      %v2172 = vpop.f32.mrb[0].mxu0
      %2173 = vmatprep.mubr.f32.mxu0 0.0
      %2174 = vmatmul.mubr.f32.gmra.mrb[0].mxu0 %v400
      %v2175 = vpop.f32.mrb[0].mxu0
      %v2176 = vadd.f32 %v1951, %v2175
      %v2177 = vpop.f32.mrb[0].mxu0
      %2178 = vmatprep.mubr.f32.mxu0 0.0
      %2179 = vmatmul.mubr.f32.gmra.mrb[0].mxu0 %v403
      %v2180 = vpop.f32.mrb[0].mxu0
      %v2181 = vadd.f32 %v1956, %v2180
      %v2182 = vpop.f32.mrb[0].mxu0
      %2183 = vmatprep.mubr.f32.mxu0 0.0
      %2184 = vmatmul.mubr.f32.gmra.mrb[0].mxu0 %v406
      %v2185 = vpop.f32.mrb[0].mxu0
      %v2186 = vadd.f32 %v1961, %v2185
      %v2187 = vpop.f32.mrb[0].mxu0
      %2188 = vmatprep.mubr.f32.mxu0 0.0
      %2189 = vmatmul.mubr.f32.gmra.mrb[0].mxu0 %v409
      %v2190 = vpop.f32.mrb[0].mxu0
      %v2191 = vadd.f32 %v1966, %v2190
      %v2192 = vpop.f32.mrb[0].mxu0
      %2193 = vmatprep.mubr.f32.mxu0 0.0
      %2194 = vmatmul.mubr.f32.gmra.mrb[0].mxu0 %v412
      %v2195 = vpop.f32.mrb[0].mxu0
      %v2196 = vadd.f32 %v1971, %v2195
      %v2197 = vpop.f32.mrb[0].mxu0
      %2198 = vmatprep.mubr.f32.mxu0 0.0
      %2199 = vmatmul.mubr.f32.gmra.mrb[0].mxu0 %v415
      %v2200 = vpop.f32.mrb[0].mxu0
      %v2201 = vadd.f32 %v1976, %v2200
      %v2202 = vpop.f32.mrb[0].mxu0
      %2203 = vmatprep.mubr.f32.mxu0 0.0
      %2204 = vmatmul.mubr.f32.gmra.mrb[0].mxu0 %v418
      %v2205 = vpop.f32.mrb[0].mxu0
      %v2206 = vadd.f32 %v1981, %v2205
      %v2207 = vpop.f32.mrb[0].mxu0
      %2208 = vmatprep.mubr.f32.mxu0 0.0
      %2209 = vmatmul.mubr.f32.gmra.mrb[0].mxu0 %v421
      %v2210 = vpop.f32.mrb[0].mxu0
      %v2211 = vadd.f32 %v1986, %v2210
      %v2212 = vpop.f32.mrb[0].mxu0
      %2213 = vmatprep.mubr.f32.mxu0 0.0
      %2214 = vmatmul.mubr.f32.gmra.mrb[0].mxu0 %v424
      %v2215 = vpop.f32.mrb[0].mxu0
      %v2216 = vadd.f32 %v1991, %v2215
      %v2217 = vpop.f32.mrb[0].mxu0
      %2218 = vmatprep.mubr.f32.mxu0 0.0
      %2219 = vmatmul.mubr.f32.gmra.mrb[0].mxu0 %v427
      %v2220 = vpop.f32.mrb[0].mxu0
      %v2221 = vadd.f32 %v1996, %v2220
      %v2222 = vpop.f32.mrb[0].mxu0
      %2223 = vmatprep.mubr.f32.mxu0 0.0
      %2224 = vmatmul.mubr.f32.gmra.mrb[0].mxu0 %v430
      %v2225 = vpop.f32.mrb[0].mxu0
      %v2226 = vadd.f32 %v2001, %v2225
      %v2227 = vpop.f32.mrb[0].mxu0
      %2228 = vmatprep.mubr.f32.mxu0 0.0
      %2229 = vmatmul.mubr.f32.gmra.mrb[0].mxu0 %v433
      %v2230 = vpop.f32.mrb[0].mxu0
      %v2231 = vadd.f32 %v2006, %v2230
      %v2232 = vpop.f32.mrb[0].mxu0
      %2233 = vmatprep.mubr.f32.mxu0 0.0
      %2234 = vmatmul.mubr.f32.gmra.mrb[0].mxu0 %v436
      %v2235 = vpop.f32.mrb[0].mxu0
      %v2236 = vadd.f32 %v2011, %v2235
      %v2237 = vpop.f32.mrb[0].mxu0
      %2238 = vmatprep.mubr.f32.mxu0 0.0
      %2239 = vmatmul.mubr.f32.gmra.mrb[0].mxu0 %v439
      %v2240 = vpop.f32.mrb[0].mxu0
      %v2241 = vadd.f32 %v2016, %v2240
      %v2242 = vpop.f32.mrb[0].mxu0
      %2243 = vmatprep.mubr.f32.mxu0 0.0
      %2244 = vmatmul.mubr.f32.gmra.mrb[0].mxu0 %v442
      %v2245 = vpop.f32.mrb[0].mxu0
      %v2246 = vadd.f32 %v2021, %v2245
      %v2247 = vpop.f32.mrb[0].mxu0
      %2248 = vmatprep.mubr.f32.mxu0 0.0
      %2249 = vmatmul.mubr.f32.gmra.mrb[0].mxu0 %v445
      %v2250 = vpop.f32.mrb[0].mxu0
      %v2251 = vadd.f32 %v2026, %v2250
      %v2252 = vpop.f32.mrb[0].mxu0
      %2253 = vmatprep.mubr.f32.mxu0 0.0
      %2254 = vmatmul.mubr.f32.gmra.mrb[0].mxu0 %v448
      %v2255 = vpop.f32.mrb[0].mxu0
      %v2256 = vadd.f32 %v2031, %v2255
      %v2257 = vpop.f32.mrb[0].mxu0
      %2258 = vmatprep.mubr.f32.mxu0 0.0
      %2259 = vmatmul.mubr.f32.gmra.mrb[0].mxu0 %v451
      %v2260 = vpop.f32.mrb[0].mxu0
      %v2261 = vadd.f32 %v2036, %v2260
      %v2262 = vpop.f32.mrb[0].mxu0
      %2263 = vmatprep.mubr.f32.mxu0 0.0
      %2264 = vmatmul.mubr.f32.gmra.mrb[0].mxu0 %v454
      %v2265 = vpop.f32.mrb[0].mxu0
      %v2266 = vadd.f32 %v2041, %v2265
      %v2267 = vpop.f32.mrb[0].mxu0
      %2268 = vmatprep.mubr.f32.mxu0 0.0
      %2269 = vmatmul.mubr.f32.gmra.mrb[0].mxu0 %v457
      %v2270 = vpop.f32.mrb[0].mxu0
      %v2271 = vadd.f32 %v2046, %v2270
      %v2272 = vpop.f32.mrb[0].mxu0
      %2273 = vmatprep.mubr.f32.mxu0 0.0
      %2274 = vmatmul.mubr.f32.gmra.mrb[0].mxu0 %v460
      %v2275 = vpop.f32.mrb[0].mxu0
      %v2276 = vadd.f32 %v2051, %v2275
      %v2277 = vpop.f32.mrb[0].mxu0
      %2278 = vmatprep.mubr.f32.mxu0 0.0
      %2279 = vmatmul.mubr.f32.gmra.mrb[0].mxu0 %v463
      %v2280 = vpop.f32.mrb[0].mxu0
      %v2281 = vadd.f32 %v2056, %v2280
      %v2282 = vpop.f32.mrb[0].mxu0
      %2283 = vmatprep.mubr.f32.mxu0 0.0
      %2284 = vmatmul.mubr.f32.gmra.mrb[0].mxu0 %v466
      %v2285 = vpop.f32.mrb[0].mxu0
      %v2286 = vadd.f32 %v2061, %v2285
      %v2287 = vpop.f32.mrb[0].mxu0
      %2288 = vmatprep.mubr.f32.mxu0 0.0
      %2289 = vmatmul.mubr.f32.gmra.mrb[0].mxu0 %v469
      %v2290 = vpop.f32.mrb[0].mxu0
      %v2291 = vadd.f32 %v2066, %v2290
      %v2292 = vpop.f32.mrb[0].mxu0
      %2293 = vdwg.mxu0
      %v2294 = vld [vmem:[%s7] sm:$0x1]
      %v2296 = vlaneseq
      %v2297 = vshrl.u32 %v2296, 7
      %v2298 = vsub.s32 0, %v2297
      %v2299 = vrot.slane %v2294, %v2298
      %v2301 = vadd.f32 %v2136, %v2299
      %v2302 = vadd.f32 %v2141, %v2299
      %v2303 = vadd.f32 %v2146, %v2299
      %v2304 = vadd.f32 %v2151, %v2299
      %v2305 = vadd.f32 %v2156, %v2299
      %v2306 = vadd.f32 %v2161, %v2299
      %v2307 = vadd.f32 %v2166, %v2299
      %v2308 = vadd.f32 %v2171, %v2299
      %v2309 = vadd.f32 %v2176, %v2299
      %v2310 = vadd.f32 %v2181, %v2299
      %v2311 = vadd.f32 %v2186, %v2299
      %v2312 = vadd.f32 %v2191, %v2299
      %v2313 = vadd.f32 %v2196, %v2299
      %v2314 = vadd.f32 %v2201, %v2299
      %v2315 = vadd.f32 %v2206, %v2299
      %v2316 = vadd.f32 %v2211, %v2299
      %v2317 = vadd.f32 %v2216, %v2299
      %v2318 = vadd.f32 %v2221, %v2299
      %v2319 = vadd.f32 %v2226, %v2299
      %v2320 = vadd.f32 %v2231, %v2299
      %v2321 = vadd.f32 %v2236, %v2299
      %v2322 = vadd.f32 %v2241, %v2299
      %v2323 = vadd.f32 %v2246, %v2299
      %v2324 = vadd.f32 %v2251, %v2299
      %v2325 = vadd.f32 %v2256, %v2299
      %v2326 = vadd.f32 %v2261, %v2299
      %v2327 = vadd.f32 %v2266, %v2299
      %v2328 = vadd.f32 %v2271, %v2299
      %v2329 = vadd.f32 %v2276, %v2299
      %v2330 = vadd.f32 %v2281, %v2299
      %v2331 = vadd.f32 %v2286, %v2299
      %v2332 = vadd.f32 %v2291, %v2299
      %v2333 = vld [vmem:[%s8] sm:$0x1]
      %v2335 = vlaneseq
      %v2336 = vshrl.u32 %v2335, 7
      %v2337 = vsub.s32 0, %v2336
      %v2338 = vrot.slane %v2333, %v2337
      %v2340 = vmax.f32 %v2301, %v2338
      %v2341 = vmax.f32 %v2302, %v2338
      %v2342 = vmax.f32 %v2303, %v2338
      %v2343 = vmax.f32 %v2304, %v2338
      %v2344 = vmax.f32 %v2305, %v2338
      %v2345 = vmax.f32 %v2306, %v2338
      %v2346 = vmax.f32 %v2307, %v2338
      %v2347 = vmax.f32 %v2308, %v2338
      %v2348 = vmax.f32 %v2309, %v2338
      %v2349 = vmax.f32 %v2310, %v2338
      %v2350 = vmax.f32 %v2311, %v2338
      %v2351 = vmax.f32 %v2312, %v2338
      %v2352 = vmax.f32 %v2313, %v2338
      %v2353 = vmax.f32 %v2314, %v2338
      %v2354 = vmax.f32 %v2315, %v2338
      %v2355 = vmax.f32 %v2316, %v2338
      %v2356 = vmax.f32 %v2317, %v2338
      %v2357 = vmax.f32 %v2318, %v2338
      %v2358 = vmax.f32 %v2319, %v2338
      %v2359 = vmax.f32 %v2320, %v2338
      %v2360 = vmax.f32 %v2321, %v2338
      %v2361 = vmax.f32 %v2322, %v2338
      %v2362 = vmax.f32 %v2323, %v2338
      %v2363 = vmax.f32 %v2324, %v2338
      %v2364 = vmax.f32 %v2325, %v2338
      %v2365 = vmax.f32 %v2326, %v2338
      %v2366 = vmax.f32 %v2327, %v2338
      %v2367 = vmax.f32 %v2328, %v2338
      %v2368 = vmax.f32 %v2329, %v2338
      %v2369 = vmax.f32 %v2330, %v2338
      %v2370 = vmax.f32 %v2331, %v2338
      %v2371 = vmax.f32 %v2332, %v2338
      %2372 = vst.msk [vmem:[%s332] sm:$0xff] %vm374, %v2340
      %2373 = vst.msk [vmem:[%s332 + $0x8] sm:$0xff] %vm374, %v2341
      %2374 = vst.msk [vmem:[%s332 + $0x10] sm:$0xff] %vm374, %v2342
      %2375 = vst.msk [vmem:[%s332 + $0x18] sm:$0xff] %vm374, %v2343
      %2376 = vst.msk [vmem:[%s332 + $0x20] sm:$0xff] %vm374, %v2344
      %2377 = vst.msk [vmem:[%s332 + $0x28] sm:$0xff] %vm374, %v2345
      %2378 = vst.msk [vmem:[%s332 + $0x30] sm:$0xff] %vm374, %v2346
      %2379 = vst.msk [vmem:[%s332 + $0x38] sm:$0xff] %vm374, %v2347
      %2380 = vst.msk [vmem:[%s332 + $0x40] sm:$0xff] %vm374, %v2348
      %2381 = vst.msk [vmem:[%s332 + $0x48] sm:$0xff] %vm374, %v2349
      %2382 = vst.msk [vmem:[%s332 + $0x50] sm:$0xff] %vm374, %v2350
      %2383 = vst.msk [vmem:[%s332 + $0x58] sm:$0xff] %vm374, %v2351
      %2384 = vst.msk [vmem:[%s332 + $0x60] sm:$0xff] %vm374, %v2352
      %2385 = vst.msk [vmem:[%s332 + $0x68] sm:$0xff] %vm374, %v2353
      %2386 = vst.msk [vmem:[%s332 + $0x70] sm:$0xff] %vm374, %v2354
      %2387 = vst.msk [vmem:[%s332 + $0x78] sm:$0xff] %vm374, %v2355
      %2388 = vst.msk [vmem:[%s332 + $0x80] sm:$0xff] %vm374, %v2356
      %2389 = vst.msk [vmem:[%s332 + $0x88] sm:$0xff] %vm374, %v2357
      %2390 = vst.msk [vmem:[%s332 + $0x90] sm:$0xff] %vm374, %v2358
      %2391 = vst.msk [vmem:[%s332 + $0x98] sm:$0xff] %vm374, %v2359
      %2392 = vst.msk [vmem:[%s332 + $0xa0] sm:$0xff] %vm374, %v2360
      %2393 = vst.msk [vmem:[%s332 + $0xa8] sm:$0xff] %vm374, %v2361
      %2394 = vst.msk [vmem:[%s332 + $0xb0] sm:$0xff] %vm374, %v2362
      %2395 = vst.msk [vmem:[%s332 + $0xb8] sm:$0xff] %vm374, %v2363
      %2396 = vst.msk [vmem:[%s332 + $0xc0] sm:$0xff] %vm374, %v2364
      %2397 = vst.msk [vmem:[%s332 + $0xc8] sm:$0xff] %vm374, %v2365
      %2398 = vst.msk [vmem:[%s332 + $0xd0] sm:$0xff] %vm374, %v2366
      %2399 = vst.msk [vmem:[%s332 + $0xd8] sm:$0xff] %vm374, %v2367
      %2400 = vst.msk [vmem:[%s332 + $0xe0] sm:$0xff] %vm374, %v2368
      %2401 = vst.msk [vmem:[%s332 + $0xe8] sm:$0xff] %vm374, %v2369
      %2402 = vst.msk [vmem:[%s332 + $0xf0] sm:$0xff] %vm374, %v2370
      %2403 = vst.msk [vmem:[%s332 + $0xf8] sm:$0xff] %vm374, %v2371
      %p2404 = scmp.lt.s32.totalorder %s20, 1
      %s2405 = scalar_select %p2404, %s20, 1
      %s2406 = smul.addr %s2405, 32
      %s2407 = smul.addr %s2406, 8
      %s2408 = scalar_lea.vmem %s9, %s2407
      // Predicated region
      $region57: #{inverted_residual_forward.1} parent=55 // pred_check
        %p2409 = pneg %p232
      $region58: #{inverted_residual_forward.1} parent=55 // pred_check_branch
        %2411 = sbr.rel (%p2409) target = $region60
      $region59: #{inverted_residual_forward.1} parent=55 // pred_region
        _
      $region60: #{inverted_residual_forward.1} parent=55 // pred_fallthru
        _
    $region56: #{inverted_residual_forward.1} parent=5 // pred_fallthru
      _
    %p2412 = scmp.le.s32.totalorder 2, %s15
    // Predicated region
    $region61: #{inverted_residual_forward.1} parent=5 // pred_check
      %p2413 = pneg %p2412
    $region62: #{inverted_residual_forward.1} parent=5 // pred_check_branch
      %2415 = sbr.rel (%p2413) target = $region64
    $region63: #{inverted_residual_forward.1} parent=5 // pred_region
      %s2416 = ssub.s32 %s15, 2
      // Predicated region
      $region65: #{inverted_residual_forward.1} parent=63 // pred_check
        %p2417 = pneg %p238
      $region66: #{inverted_residual_forward.1} parent=63 // pred_check_branch
        %2419 = sbr.rel (%p2417) target = $region68
      $region67: #{inverted_residual_forward.1} parent=63 // pred_region
        %p2420 = scmp.lt.s32.totalorder %s21, 1
        %s2421 = scalar_select %p2420, %s21, 1
        %s2422 = smul.addr %s2421, 32
        %s2423 = smul.addr %s2422, 8
        %s2424 = scalar_lea.vmem %s9, %s2423
      $region68: #{inverted_residual_forward.1} parent=63 // pred_fallthru
        _
    $region64: #{inverted_residual_forward.1} parent=5 // pred_fallthru
      _
  $region6: #{inverted_residual_forward.1} parent=0 // loop_footer
    %s19 = sadd.s32 1, %s15
  $region7: #{inverted_residual_forward.1} parent=0 // loop_footer_branch
    %14 = sbr.rel target = $region3
  $region8: #{inverted_residual_forward.1} parent=0 // loop_exit
    _

</llo_original>
